<compile_context>
chip_gen: v7x
topology: tpu7x:2x2x1
jax: 0.10.0
libtpu: 0.0.40
codegen_flags: <defaults>
</compile_context>

<pallas_src>
import math
import random as pyrandom

import jax
import jax.numpy as jnp
from jax.experimental import pallas as pl
from jax.experimental.pallas import tpu as pltpu


# --------------------------------------------------------------------------------------
# Fused Pallas kernel: the whole decode loop (grid axis = decode step, sequential)
# --------------------------------------------------------------------------------------
def _decode_loop_kernel(tf_ref,                      # scalar prefetch: (T-1,) int32 TF mask
                        tgt_gate_ref,                # (1, B, 3H) teacher-forced word-gate, step t
                        h0_ref,                      # (B, H)     initial hidden state
                        enc_ref,                     # (B, S, H)  encoder output
                        enc_score_ref,               # (B, S)     folded enc half of attn score
                        w1h_u_ref,                   # (1, H)     folded hidden half of attn score
                        emb_gate_ref,                # (Vp, 3H)   embedding folded into gate space
                        wc_gate_ref,                 # (H, 3H)    context -> gates (i|g|o)
                        wh_gate_ref,                 # (H, 3H)    hidden  -> gates (i|g|o)
                        b_gate_ref,                  # (1, 3H)    fused gate bias
                        wout_ref,                    # (H, Vp)    padded vocab projection
                        bout_ref,                    # (1, Vp)    padded bias (-1e30 in padding)
                        out_ref,                     # (1, B, Vp) logits for step t
                        h_sc,                        # VMEM (B, H)   carried hidden state
                        onehot_sc):                  # VMEM (B, Vp)  one-hot of previous argmax
    f32 = jnp.float32
    t = pl.program_id(0)
    B, S, H = enc_ref.shape
    Vp = emb_gate_ref.shape[0]

    lane = jax.lax.broadcasted_iota(jnp.int32, (B, Vp), 1)

    @pl.when(t == 0)
    def _():
        h_sc[...] = h0_ref[...]
        # decoder_current_input_word starts as torch.ones(...) -> word index 1 for every row
        onehot_sc[...] = (lane == 1).astype(f32)

    h_prev = h_sc[...]                                                     # (B, H)

    # ---------------- attention (folded dense chain; const cancels in softmax) -------
    h_score = jnp.sum(h_prev * w1h_u_ref[...], axis=-1, keepdims=True)     # (B, 1)
    scores = enc_score_ref[...] + h_score                                  # (B, S)
    scores = scores - jnp.max(scores, axis=1, keepdims=True)
    e = jnp.exp(scores)
    attn = e * pl.reciprocal(jnp.sum(e, axis=1, keepdims=True), approx=True)   # (B, S)
    context = jnp.sum(attn[:, :, None] * enc_ref[...], axis=1)             # (B, H) VPU sum

    # ---------------- input word contribution (teacher forcing vs previous argmax) ---
    prev_gate = jnp.dot(onehot_sc[...], emb_gate_ref[...],
                        preferred_element_type=f32)                        # (B, 3H)
    use_tf = (tf_ref[t] == 1).astype(f32)                                  # scalar 0/1
    word_gate = use_tf * tgt_gate_ref[0] + (1.0 - use_tf) * prev_gate      # (B, 3H)

    # ---------------- LSTM cell (c_prev == 0 as in reference; forget gate dead) ------
    gates = (word_gate
             + jnp.dot(context, wc_gate_ref[...], preferred_element_type=f32)
             + jnp.dot(h_prev, wh_gate_ref[...], preferred_element_type=f32)
             + b_gate_ref[...])                                            # (B, 3H)
    i_g = jax.nn.sigmoid(gates[:, 0:H])
    g_g = jnp.tanh(gates[:, H:2 * H])
    o_g = jax.nn.sigmoid(gates[:, 2 * H:3 * H])
    h_new = o_g * jnp.tanh(i_g * g_g)                                      # (B, H)

    # ---------------- vocab projection (lane-dense padded V) -------------------------
    logits = (jnp.dot(h_new, wout_ref[...], preferred_element_type=f32)
              + bout_ref[...])                                             # (B, Vp)
    out_ref[0] = logits

    # ---------------- carry state to the next step ------------------------------------
    h_sc[...] = h_new
    mx = jnp.max(logits, axis=-1, keepdims=True)
    first_idx = jnp.min(jnp.where(logits == mx, lane, Vp), axis=-1, keepdims=True)
    onehot_sc[...] = (lane == first_idx).astype(f32)                       # first-occurrence argmax


def _build_decode_call(B, S, H, Vp, Tm1):
    H3 = 3 * H
    grid_spec = pltpu.PrefetchScalarGridSpec(
        num_scalar_prefetch=1,
        grid=(Tm1,),
        in_specs=[
            pl.BlockSpec((1, B, H3), lambda t, tf: (t, 0, 0)),       # per-step TF word-gate
            pl.BlockSpec((B, H), lambda t, tf: (0, 0)),              # h0 (VMEM-resident)
            pl.BlockSpec((B, S, H), lambda t, tf: (0, 0, 0)),        # encoder output
            pl.BlockSpec((B, S), lambda t, tf: (0, 0)),              # folded enc attention score
            pl.BlockSpec((1, H), lambda t, tf: (0, 0)),              # folded hidden score vector
            pl.BlockSpec((Vp, H3), lambda t, tf: (0, 0)),            # embedding folded to gates
            pl.BlockSpec((H, H3), lambda t, tf: (0, 0)),             # context -> gates
            pl.BlockSpec((H, H3), lambda t, tf: (0, 0)),             # hidden  -> gates
            pl.BlockSpec((1, H3), lambda t, tf: (0, 0)),             # fused gate bias
            pl.BlockSpec((H, Vp), lambda t, tf: (0, 0)),             # padded vocab projection
            pl.BlockSpec((1, Vp), lambda t, tf: (0, 0)),             # padded vocab bias
        ],
        out_specs=pl.BlockSpec((1, B, Vp), lambda t, tf: (t, 0, 0)),
        scratch_shapes=[pltpu.VMEM((B, H), jnp.float32),
                        pltpu.VMEM((B, Vp), jnp.float32)],
    )
    return pl.pallas_call(
        _decode_loop_kernel,
        grid_spec=grid_spec,
        out_shape=jax.ShapeDtypeStruct((Tm1, B, Vp), jnp.float32),
        compiler_params=pltpu.CompilerParams(dimension_semantics=("arbitrary",)),
    )


# --------------------------------------------------------------------------------------
# Parameter folding / padding (done once per call, outside the kernel, under jit)
# --------------------------------------------------------------------------------------
def _round_up(x, m):
    return ((x + m - 1) // m) * m


def _fold_and_pad(params, v_pad):
    H = params["w2"].shape[0]
    V = params["wout"].shape[1]

    # dense1..dense4 + to_weight have no nonlinearity -> fold into a single (H,1) vector per half
    u = params["w2"] @ params["w3"] @ params["w4"] @ params["wv"].T        # (H, 1)
    w1e_u = params["w1e"] @ u                                              # (H, 1)
    w1h_u = (params["w1h"] @ u).reshape(1, H)                              # (1, H)
    # (bias-chain constant is dropped: it shifts every score equally and cancels in softmax)

    def igo(w):  # keep input/cell/output gate columns; forget gate is dead (c_prev == 0)
        return jnp.concatenate([w[:, 0:H], w[:, 2 * H:3 * H], w[:, 3 * H:4 * H]], axis=1)

    w_gate_e = igo(params["wih_e"])                                        # (D, 3H)
    w_gate_c = igo(params["wih_c"])                                        # (H, 3H)
    w_gate_h = igo(params["whh"])                                          # (H, 3H)
    b_gate = igo(params["bih"]) + igo(params["bhh"])                       # (1, 3H)

    # embedding folded directly into gate space: onehot @ (emb @ W_word) per decode step
    emb_gate = params["emb"] @ w_gate_e                                    # (V, 3H)
    emb_gate_pad = jnp.zeros((v_pad, 3 * H), jnp.float32).at[:V, :].set(emb_gate)

    wout_pad = jnp.zeros((H, v_pad), jnp.float32).at[:, :V].set(params["wout"])
    bout_pad = jnp.full((1, v_pad), -1e30, jnp.float32).at[:, :V].set(params["bout"])

    return dict(w1e_u=w1e_u, w1h_u=w1h_u, w_gate_e=w_gate_e, w_gate_c=w_gate_c,
                w_gate_h=w_gate_h, b_gate=b_gate, emb_gate_pad=emb_gate_pad,
                wout_pad=wout_pad, bout_pad=bout_pad)


@jax.jit
def _fused_decode(params, encoder_last_hidden_state, encoder_output, targets, tf_mask):
    B, S, H = encoder_output.shape
    V = params["wout"].shape[1]
    Vp = _round_up(max(V, 128), 128)
    Tm1 = targets.shape[1] - 1

    f = _fold_and_pad(params, Vp)
    h0 = encoder_last_hidden_state[0]                                      # (B, H)

    # teacher-forced word-gate contributions for every step (step-major, lane-dense 3H)
    tgt_emb = jnp.take(params["emb"], targets[:, :Tm1], axis=0)            # (B, T-1, D)
    tgt_gate_steps = jnp.transpose(tgt_emb @ f["w_gate_e"], (1, 0, 2))     # (T-1, B, 3H)

    # step-invariant encoder half of the folded attention score, computed once per sequence
    enc_score = (encoder_output @ f["w1e_u"])[..., 0]                      # (B, S)

    logits_pad = _build_decode_call(B, S, H, Vp, Tm1)(
        tf_mask, tgt_gate_steps, h0, encoder_output, enc_score,
        f["w1h_u"], f["emb_gate_pad"], f["w_gate_c"], f["w_gate_h"], f["b_gate"],
        f["wout_pad"], f["bout_pad"])                                      # (T-1, B, Vp)

    seq_logprob = jnp.transpose(logits_pad, (1, 0, 2))[:, :, :V]           # (B, T-1, V)
    seq_predictions = jnp.argmax(seq_logprob, axis=2)                      # (B, T-1)
    return seq_logprob, seq_predictions


# --------------------------------------------------------------------------------------
# Host-side glue: teacher-forcing coin flips + public forward (mode='train' semantics)
# --------------------------------------------------------------------------------------
def _expit(x):
    return 1.0 / (1.0 + math.exp(-x))


def _teacher_forcing_mask(n_steps, tr_steps, tf_seed=0):
    threshold = _expit(tr_steps / 20 + 0.85)
    rng = pyrandom.Random(tf_seed)
    flips = [1 if rng.uniform(0.05, 0.995) > threshold else 0 for _ in range(n_steps)]
    return jnp.asarray(flips, dtype=jnp.int32)


def lstm_attn_decode_forward(params, encoder_last_hidden_state, encoder_output,
                             targets, tr_steps=0, tf_seed=0):
    T = targets.shape[1]
    tf_mask = _teacher_forcing_mask(T - 1, tr_steps, tf_seed)
    return _fused_decode(params, encoder_last_hidden_state, encoder_output, targets, tf_mask)


# --------------------------------------------------------------------------------------
# Parameter init (deterministic, synthetic — shapes follow the decoder's __init__)
# --------------------------------------------------------------------------------------
def init_params(key, hidden, word_dim, vocab):
    ks = list(jax.random.split(key, 24))
    k = iter(ks)

    def u(shape, fan_in):
        b = 1.0 / math.sqrt(fan_in)
        return jax.random.uniform(next(k), shape, jnp.float32, minval=-b, maxval=b)

    H, D, V = hidden, word_dim, vocab
    return {
        "emb": jax.random.normal(next(k), (V, D), jnp.float32),   # nn.Embedding
        # attention.dense1 (2H -> H), split into [encoder | hidden] halves
        "w1e": u((H, H), 2 * H), "w1h": u((H, H), 2 * H), "b1": u((1, H), 2 * H),
        "w2": u((H, H), H), "b2": u((1, H), H),
        "w3": u((H, H), H), "b3": u((1, H), H),
        "w4": u((H, H), H), "b4": u((1, H), H),
        "wv": u((1, H), H),                                       # to_weight (H -> 1, no bias)
        # LSTM(input = D + H, hidden = H), W_ih split into [word | context] halves
        "wih_e": u((D, 4 * H), H), "wih_c": u((H, 4 * H), H), "bih": u((1, 4 * H), H),
        "whh": u((H, 4 * H), H), "bhh": u((1, 4 * H), H),
        # to_final_output (H -> V)
        "wout": u((H, V), H), "bout": u((1, V), H),
    }


# --------------------------------------------------------------------------------------
# Pure-JAX unfolded reference (full decode loop, same teacher-forcing mask), used as a
# tolerance check of the folded/fused kernel math including the carried state + argmax feedback.
# --------------------------------------------------------------------------------------
def _reference_all_logits(params, h0, enc, targets, tf_mask):
    B, S, H = enc.shape
    Tm1 = targets.shape[1] - 1
    h = h0
    prev_word = jnp.ones((B,), jnp.int32)
    logits_all = []
    for t in range(Tm1):
        if int(tf_mask[t]) == 1:
            word = targets[:, t]
        else:
            word = prev_word
        emb = jnp.take(params["emb"], word, axis=0)
        enc2 = enc.reshape(B * S, H)
        h_rep = jnp.broadcast_to(h[:, None, :], (B, S, H)).reshape(B * S, H)
        x = enc2 @ params["w1e"] + h_rep @ params["w1h"] + params["b1"]
        x = x @ params["w2"] + params["b2"]
        x = x @ params["w3"] + params["b3"]
        x = x @ params["w4"] + params["b4"]
        scores = jnp.sum(x.reshape(B, S, H) * params["wv"][None, :, :], axis=-1)
        attn = jax.nn.softmax(scores, axis=1)
        context = jnp.einsum("bs,bsh->bh", attn, enc)
        gates = (emb @ params["wih_e"] + context @ params["wih_c"] + params["bih"]
                 + h @ params["whh"] + params["bhh"])
        i_g = jax.nn.sigmoid(gates[:, 0:H])
        g_g = jnp.tanh(gates[:, 2 * H:3 * H])
        o_g = jax.nn.sigmoid(gates[:, 3 * H:4 * H])
        h = o_g * jnp.tanh(i_g * g_g)
        logits = h @ params["wout"] + params["bout"]
        logits_all.append(logits)
        prev_word = jnp.argmax(logits, axis=1).astype(jnp.int32)
    return jnp.stack(logits_all, axis=1)                                   # (B, T-1, V)


# --------------------------------------------------------------------------------------
if __name__ == "__main__":
    B, S, H, D, V, T = 2, 8, 32, 64, 40, 6   # batch, enc_seq, hidden, word_dim, vocab, tgt_len

    key = jax.random.PRNGKey(0)
    kp, kh, ke, kt = jax.random.split(key, 4)

    params = init_params(kp, hidden=H, word_dim=D, vocab=V)
    encoder_last_hidden_state = jax.random.normal(kh, (1, B, H), jnp.float32)
    encoder_output = jax.random.normal(ke, (B, S, H), jnp.float32)
    targets = jax.random.randint(kt, (B, T), 0, V, dtype=jnp.int32)

    with jax.default_matmul_precision("float32"):
        seq_logprob, seq_pred = lstm_attn_decode_forward(
            params, encoder_last_hidden_state, encoder_output, targets, tr_steps=10, tf_seed=0)
        jax.block_until_ready((seq_logprob, seq_pred))

        assert seq_logprob.shape == (B, T - 1, V)
        assert seq_pred.shape == (B, T - 1)

        # full-sequence tolerance check of the fused/folded kernel vs. the unfolded JAX math
        tf_mask = _teacher_forcing_mask(T - 1, tr_steps=10, tf_seed=0)
        ref = _reference_all_logits(params, encoder_last_hidden_state[0], encoder_output,
                                    targets, tf_mask)
        assert jnp.allclose(seq_logprob, ref, atol=5e-2, rtol=5e-2)

    print("KERNEL_OK")
</pallas_src>

<mosaic_0001>
module attributes {stable_mosaic.version = 11 : i64} {
  func.func @_decode_loop_kernel(%arg0: i32, %arg1: memref<5xi32, #tpu.memory_space<smem>>, %arg2: memref<1x2x96xf32, #tpu.memory_space<vmem>>, %arg3: memref<2x32xf32, #tpu.memory_space<vmem>>, %arg4: memref<2x8x32xf32, #tpu.memory_space<vmem>>, %arg5: memref<2x8xf32, #tpu.memory_space<vmem>>, %arg6: memref<1x32xf32, #tpu.memory_space<vmem>>, %arg7: memref<128x96xf32, #tpu.memory_space<vmem>>, %arg8: memref<32x96xf32, #tpu.memory_space<vmem>>, %arg9: memref<32x96xf32, #tpu.memory_space<vmem>>, %arg10: memref<1x96xf32, #tpu.memory_space<vmem>>, %arg11: memref<32x128xf32, #tpu.memory_space<vmem>>, %arg12: memref<1x128xf32, #tpu.memory_space<vmem>>, %arg13: memref<1x2x128xf32, #tpu.memory_space<vmem>>, %arg14: memref<2x32xf32, #tpu.memory_space<vmem>>, %arg15: memref<2x128xf32, #tpu.memory_space<vmem>>) attributes {dimension_semantics = [#tpu.dimension_semantics<arbitrary>], iteration_bounds = array<i64: 5>, scalar_prefetch = 1 : i64, scratch_operands = 2 : i64, tpu.core_type = #tpu.core_type<tc>, window_params = [{transform_indices = @transform_0, window_bounds = array<i64: 1, 2, 96>}, {pipeline_mode = #tpu.pipeline_mode<synchronous>, transform_indices = @transform_1, window_bounds = array<i64: 2, 32>}, {pipeline_mode = #tpu.pipeline_mode<synchronous>, transform_indices = @transform_2, window_bounds = array<i64: 2, 8, 32>}, {pipeline_mode = #tpu.pipeline_mode<synchronous>, transform_indices = @transform_3, window_bounds = array<i64: 2, 8>}, {pipeline_mode = #tpu.pipeline_mode<synchronous>, transform_indices = @transform_4, window_bounds = array<i64: 1, 32>}, {pipeline_mode = #tpu.pipeline_mode<synchronous>, transform_indices = @transform_5, window_bounds = array<i64: 128, 96>}, {pipeline_mode = #tpu.pipeline_mode<synchronous>, transform_indices = @transform_6, window_bounds = array<i64: 32, 96>}, {pipeline_mode = #tpu.pipeline_mode<synchronous>, transform_indices = @transform_7, window_bounds = array<i64: 32, 96>}, {pipeline_mode = #tpu.pipeline_mode<synchronous>, transform_indices = @transform_8, window_bounds = array<i64: 1, 96>}, {pipeline_mode = #tpu.pipeline_mode<synchronous>, transform_indices = @transform_9, window_bounds = array<i64: 32, 128>}, {pipeline_mode = #tpu.pipeline_mode<synchronous>, transform_indices = @transform_10, window_bounds = array<i64: 1, 128>}, {transform_indices = @transform_11, window_bounds = array<i64: 1, 2, 128>}]} {
    %0 = tpu.iota {dimensions = array<i32: 1>} : vector<2x128xi32>
    %c0_i32 = arith.constant 0 : i32
    %1 = arith.cmpi eq, %arg0, %c0_i32 : i32
    %2 = arith.extui %1 : i1 to i32
    %c0_i32_0 = arith.constant 0 : i32
    %3 = arith.cmpi ne, %2, %c0_i32_0 : i32
    scf.if %3 {
      %c0_45 = arith.constant 0 : index
      %c0_46 = arith.constant 0 : index
      %92 = vector.load %arg3[%c0_45, %c0_46] : memref<2x32xf32, #tpu.memory_space<vmem>>, vector<2x32xf32>
      %c0_47 = arith.constant 0 : index
      %c0_48 = arith.constant 0 : index
      %93 = vector.load %arg14[%c0_47, %c0_48] : memref<2x32xf32, #tpu.memory_space<vmem>>, vector<2x32xf32>
      tpu.vector_store %arg14[%c0_47, %c0_48], %92 {strides = array<i32>} : memref<2x32xf32, #tpu.memory_space<vmem>>, vector<2x32xf32>,
      %c1_i32_49 = arith.constant 1 : i32
      %94 = vector.broadcast %c1_i32_49 : i32 to vector<2x128xi32>
      %95 = arith.cmpi eq, %0, %94 : vector<2x128xi32>
      %96 = arith.extui %95 : vector<2x128xi1> to vector<2x128xi32>
      %97 = arith.sitofp %96 : vector<2x128xi32> to vector<2x128xf32>
      %c0_50 = arith.constant 0 : index
      %c0_51 = arith.constant 0 : index
      %98 = vector.load %arg15[%c0_50, %c0_51] : memref<2x128xf32, #tpu.memory_space<vmem>>, vector<2x128xf32>
      tpu.vector_store %arg15[%c0_50, %c0_51], %97 {strides = array<i32>} : memref<2x128xf32, #tpu.memory_space<vmem>>, vector<2x128xf32>,
    } else {
    }
    %c0 = arith.constant 0 : index
    %c0_1 = arith.constant 0 : index
    %4 = vector.load %arg14[%c0, %c0_1] : memref<2x32xf32, #tpu.memory_space<vmem>>, vector<2x32xf32>
    %c0_2 = arith.constant 0 : index
    %c0_3 = arith.constant 0 : index
    %5 = vector.load %arg6[%c0_2, %c0_3] : memref<1x32xf32, #tpu.memory_space<vmem>>, vector<1x32xf32>
    %6 = vector.broadcast %5 : vector<1x32xf32> to vector<2x32xf32>
    %7 = arith.mulf %4, %6 : vector<2x32xf32>
    %cst = arith.constant dense<0.000000e+00> : vector<2xf32>
    %8 = vector.multi_reduction <add>, %7, %cst [1] : vector<2x32xf32> to vector<2xf32>
    %9 = vector.shape_cast %8 : vector<2xf32> to vector<2x1xf32>
    %c0_4 = arith.constant 0 : index
    %c0_5 = arith.constant 0 : index
    %10 = vector.load %arg5[%c0_4, %c0_5] : memref<2x8xf32, #tpu.memory_space<vmem>>, vector<2x8xf32>
    %11 = vector.broadcast %9 : vector<2x1xf32> to vector<2x8xf32>
    %12 = arith.addf %10, %11 : vector<2x8xf32>
    %cst_6 = arith.constant dense<0xFF800000> : vector<2xf32>
    %13 = vector.multi_reduction <maximumf>, %12, %cst_6 [1] : vector<2x8xf32> to vector<2xf32>
    %14 = vector.shape_cast %13 : vector<2xf32> to vector<2x1xf32>
    %15 = vector.broadcast %14 : vector<2x1xf32> to vector<2x8xf32>
    %16 = arith.subf %12, %15 : vector<2x8xf32>
    %17 = math.exp %16 : vector<2x8xf32>
    %cst_7 = arith.constant dense<0.000000e+00> : vector<2xf32>
    %18 = vector.multi_reduction <add>, %17, %cst_7 [1] : vector<2x8xf32> to vector<2xf32>
    %19 = vector.shape_cast %18 : vector<2xf32> to vector<2x1xf32>
    %20 = tpu.reciprocal %19 {approx = true} : vector<2x1xf32> -> vector<2x1xf32>
    %21 = vector.broadcast %20 : vector<2x1xf32> to vector<2x8xf32>
    %22 = arith.mulf %17, %21 : vector<2x8xf32>
    %23 = vector.shape_cast %22 : vector<2x8xf32> to vector<2x8x1xf32>
    %c0_8 = arith.constant 0 : index
    %c0_9 = arith.constant 0 : index
    %c0_10 = arith.constant 0 : index
    %24 = vector.load %arg4[%c0_8, %c0_9, %c0_10] : memref<2x8x32xf32, #tpu.memory_space<vmem>>, vector<2x8x32xf32>
    %25 = vector.broadcast %23 : vector<2x8x1xf32> to vector<2x8x32xf32>
    %26 = arith.mulf %25, %24 : vector<2x8x32xf32>
    %cst_11 = arith.constant dense<0.000000e+00> : vector<2x32xf32>
    %27 = vector.multi_reduction <add>, %26, %cst_11 [1] : vector<2x8x32xf32> to vector<2x32xf32>
    %c0_12 = arith.constant 0 : index
    %c0_13 = arith.constant 0 : index
    %28 = vector.load %arg15[%c0_12, %c0_13] : memref<2x128xf32, #tpu.memory_space<vmem>>, vector<2x128xf32>
    %c0_14 = arith.constant 0 : index
    %c0_15 = arith.constant 0 : index
    %29 = vector.load %arg7[%c0_14, %c0_15] : memref<128x96xf32, #tpu.memory_space<vmem>>, vector<128x96xf32>
    %cst_16 = arith.constant dense<0.000000e+00> : vector<2x96xf32>
    %30 = tpu.matmul %28, %29, %cst_16 {dimension_numbers = #tpu.dot_dimension_numbers<[1], [0], [0], [1], [0, 0, 1, 1], [], []>, precision = #tpu.contract_precision<fp32>} : vector<2x128xf32>, vector<128x96xf32>, vector<2x96xf32> -> vector<2x96xf32>
    %31 = arith.index_cast %arg0 : i32 to index
    %32 = memref.load %arg1[%31] : memref<5xi32, #tpu.memory_space<smem>>
    %c1_i32 = arith.constant 1 : i32
    %33 = arith.cmpi eq, %32, %c1_i32 : i32
    %34 = arith.extui %33 : i1 to i32
    %35 = arith.sitofp %34 : i32 to f32
    %c0_17 = arith.constant 0 : index
    %c0_18 = arith.constant 0 : index
    %c0_19 = arith.constant 0 : index
    %36 = vector.load %arg2[%c0_17, %c0_18, %c0_19] : memref<1x2x96xf32, #tpu.memory_space<vmem>>, vector<1x2x96xf32>
    %37 = vector.shape_cast %36 : vector<1x2x96xf32> to vector<2x96xf32>
    %38 = vector.broadcast %35 : f32 to vector<2x96xf32>
    %39 = arith.mulf %38, %37 : vector<2x96xf32>
    %cst_20 = arith.constant 1.000000e+00 : f32
    %40 = arith.subf %cst_20, %35 : f32
    %41 = vector.broadcast %40 : f32 to vector<2x96xf32>
    %42 = arith.mulf %41, %30 : vector<2x96xf32>
    %43 = arith.addf %39, %42 : vector<2x96xf32>
    %c0_21 = arith.constant 0 : index
    %c0_22 = arith.constant 0 : index
    %44 = vector.load %arg8[%c0_21, %c0_22] : memref<32x96xf32, #tpu.memory_space<vmem>>, vector<32x96xf32>
    %cst_23 = arith.constant dense<0.000000e+00> : vector<2x96xf32>
    %45 = tpu.matmul %27, %44, %cst_23 {dimension_numbers = #tpu.dot_dimension_numbers<[1], [0], [0], [1], [0, 0, 1, 1], [], []>, precision = #tpu.contract_precision<fp32>} : vector<2x32xf32>, vector<32x96xf32>, vector<2x96xf32> -> vector<2x96xf32>
    %46 = arith.addf %43, %45 : vector<2x96xf32>
    %c0_24 = arith.constant 0 : index
    %c0_25 = arith.constant 0 : index
    %47 = vector.load %arg9[%c0_24, %c0_25] : memref<32x96xf32, #tpu.memory_space<vmem>>, vector<32x96xf32>
    %cst_26 = arith.constant dense<0.000000e+00> : vector<2x96xf32>
    %48 = tpu.matmul %4, %47, %cst_26 {dimension_numbers = #tpu.dot_dimension_numbers<[1], [0], [0], [1], [0, 0, 1, 1], [], []>, precision = #tpu.contract_precision<fp32>} : vector<2x32xf32>, vector<32x96xf32>, vector<2x96xf32> -> vector<2x96xf32>
    %49 = arith.addf %46, %48 : vector<2x96xf32>
    %c0_27 = arith.constant 0 : index
    %c0_28 = arith.constant 0 : index
    %50 = vector.load %arg10[%c0_27, %c0_28] : memref<1x96xf32, #tpu.memory_space<vmem>>, vector<1x96xf32>
    %51 = vector.broadcast %50 : vector<1x96xf32> to vector<2x96xf32>
    %52 = arith.addf %49, %51 : vector<2x96xf32>
    %53 = vector.extract_strided_slice %52 {offsets = [0, 0], sizes = [2, 32], strides = [1, 1]} : vector<2x96xf32> to vector<2x32xf32>
    %54 = arith.negf %53 : vector<2x32xf32>
    %55 = math.exp %54 : vector<2x32xf32>
    %cst_29 = arith.constant 1.000000e+00 : f32
    %56 = vector.broadcast %cst_29 : f32 to vector<2x32xf32>
    %57 = arith.addf %56, %55 : vector<2x32xf32>
    %58 = arith.divf %56, %57 : vector<2x32xf32>
    %59 = vector.extract_strided_slice %52 {offsets = [0, 32], sizes = [2, 32], strides = [1, 1]} : vector<2x96xf32> to vector<2x32xf32>
    %60 = math.tanh %59 : vector<2x32xf32>
    %61 = vector.extract_strided_slice %52 {offsets = [0, 64], sizes = [2, 32], strides = [1, 1]} : vector<2x96xf32> to vector<2x32xf32>
    %62 = arith.negf %61 : vector<2x32xf32>
    %63 = math.exp %62 : vector<2x32xf32>
    %cst_30 = arith.constant 1.000000e+00 : f32
    %64 = vector.broadcast %cst_30 : f32 to vector<2x32xf32>
    %65 = arith.addf %64, %63 : vector<2x32xf32>
    %66 = arith.divf %64, %65 : vector<2x32xf32>
    %67 = arith.mulf %58, %60 : vector<2x32xf32>
    %68 = math.tanh %67 : vector<2x32xf32>
    %69 = arith.mulf %66, %68 : vector<2x32xf32>
    %c0_31 = arith.constant 0 : index
    %c0_32 = arith.constant 0 : index
    %70 = vector.load %arg11[%c0_31, %c0_32] : memref<32x128xf32, #tpu.memory_space<vmem>>, vector<32x128xf32>
    %cst_33 = arith.constant dense<0.000000e+00> : vector<2x128xf32>
    %71 = tpu.matmul %69, %70, %cst_33 {dimension_numbers = #tpu.dot_dimension_numbers<[1], [0], [0], [1], [0, 0, 1, 1], [], []>, precision = #tpu.contract_precision<fp32>} : vector<2x32xf32>, vector<32x128xf32>, vector<2x128xf32> -> vector<2x128xf32>
    %c0_34 = arith.constant 0 : index
    %c0_35 = arith.constant 0 : index
    %72 = vector.load %arg12[%c0_34, %c0_35] : memref<1x128xf32, #tpu.memory_space<vmem>>, vector<1x128xf32>
    %73 = vector.broadcast %72 : vector<1x128xf32> to vector<2x128xf32>
    %74 = arith.addf %71, %73 : vector<2x128xf32>
    %c0_36 = arith.constant 0 : index
    %c0_37 = arith.constant 0 : index
    %c0_38 = arith.constant 0 : index
    %75 = vector.load %arg13[%c0_36, %c0_37, %c0_38] : memref<1x2x128xf32, #tpu.memory_space<vmem>>, vector<1x2x128xf32>
    %76 = vector.shape_cast %75 : vector<1x2x128xf32> to vector<2x128xf32>
    %77 = vector.shape_cast %74 : vector<2x128xf32> to vector<1x2x128xf32>
    tpu.vector_store %arg13[%c0_36, %c0_37, %c0_38], %77 {strides = array<i32>} : memref<1x2x128xf32, #tpu.memory_space<vmem>>, vector<1x2x128xf32>,
    %c0_39 = arith.constant 0 : index
    %c0_40 = arith.constant 0 : index
    %78 = vector.load %arg14[%c0_39, %c0_40] : memref<2x32xf32, #tpu.memory_space<vmem>>, vector<2x32xf32>
    tpu.vector_store %arg14[%c0_39, %c0_40], %69 {strides = array<i32>} : memref<2x32xf32, #tpu.memory_space<vmem>>, vector<2x32xf32>,
    %cst_41 = arith.constant dense<0xFF800000> : vector<2xf32>
    %79 = vector.multi_reduction <maximumf>, %74, %cst_41 [1] : vector<2x128xf32> to vector<2xf32>
    %80 = vector.shape_cast %79 : vector<2xf32> to vector<2x1xf32>
    %81 = vector.broadcast %80 : vector<2x1xf32> to vector<2x128xf32>
    %82 = arith.cmpf oeq, %74, %81 : vector<2x128xf32>
    %c128_i32 = arith.constant 128 : i32
    %83 = vector.broadcast %c128_i32 : i32 to vector<2x128xi32>
    %84 = arith.select %82, %0, %83 : vector<2x128xi1>, vector<2x128xi32>
    %cst_42 = arith.constant dense<2147483647> : vector<2xi32>
    %85 = vector.multi_reduction <minsi>, %84, %cst_42 [1] : vector<2x128xi32> to vector<2xi32>
    %86 = vector.shape_cast %85 : vector<2xi32> to vector<2x1xi32>
    %87 = vector.broadcast %86 : vector<2x1xi32> to vector<2x128xi32>
    %88 = arith.cmpi eq, %0, %87 : vector<2x128xi32>
    %89 = arith.extui %88 : vector<2x128xi1> to vector<2x128xi32>
    %90 = arith.sitofp %89 : vector<2x128xi32> to vector<2x128xf32>
    %c0_43 = arith.constant 0 : index
    %c0_44 = arith.constant 0 : index
    %91 = vector.load %arg15[%c0_43, %c0_44] : memref<2x128xf32, #tpu.memory_space<vmem>>, vector<2x128xf32>
    tpu.vector_store %arg15[%c0_43, %c0_44], %90 {strides = array<i32>} : memref<2x128xf32, #tpu.memory_space<vmem>>, vector<2x128xf32>,
    return
  }
  func.func @transform_0(%arg0: i32, %arg1: memref<5xi32, #tpu.memory_space<smem>>) -> (i32, i32, i32) {
    %c0_i32 = arith.constant 0 : i32
    %c0_i32_0 = arith.constant 0 : i32
    %c0_i32_1 = arith.constant 0 : i32
    return %arg0, %c0_i32, %c0_i32_0 : i32, i32, i32
  }
  func.func @transform_1(%arg0: i32, %arg1: memref<5xi32, #tpu.memory_space<smem>>) -> (i32, i32) {
    %c0_i32 = arith.constant 0 : i32
    %c0_i32_0 = arith.constant 0 : i32
    %c0_i32_1 = arith.constant 0 : i32
    return %c0_i32, %c0_i32_0 : i32, i32
  }
  func.func @transform_2(%arg0: i32, %arg1: memref<5xi32, #tpu.memory_space<smem>>) -> (i32, i32, i32) {
    %c0_i32 = arith.constant 0 : i32
    %c0_i32_0 = arith.constant 0 : i32
    %c0_i32_1 = arith.constant 0 : i32
    %c0_i32_2 = arith.constant 0 : i32
    return %c0_i32, %c0_i32_0, %c0_i32_1 : i32, i32, i32
  }
  func.func @transform_3(%arg0: i32, %arg1: memref<5xi32, #tpu.memory_space<smem>>) -> (i32, i32) {
    %c0_i32 = arith.constant 0 : i32
    %c0_i32_0 = arith.constant 0 : i32
    %c0_i32_1 = arith.constant 0 : i32
    return %c0_i32, %c0_i32_0 : i32, i32
  }
  func.func @transform_4(%arg0: i32, %arg1: memref<5xi32, #tpu.memory_space<smem>>) -> (i32, i32) {
    %c0_i32 = arith.constant 0 : i32
    %c0_i32_0 = arith.constant 0 : i32
    %c0_i32_1 = arith.constant 0 : i32
    return %c0_i32, %c0_i32_0 : i32, i32
  }
  func.func @transform_5(%arg0: i32, %arg1: memref<5xi32, #tpu.memory_space<smem>>) -> (i32, i32) {
    %c0_i32 = arith.constant 0 : i32
    %c0_i32_0 = arith.constant 0 : i32
    %c0_i32_1 = arith.constant 0 : i32
    return %c0_i32, %c0_i32_0 : i32, i32
  }
  func.func @transform_6(%arg0: i32, %arg1: memref<5xi32, #tpu.memory_space<smem>>) -> (i32, i32) {
    %c0_i32 = arith.constant 0 : i32
    %c0_i32_0 = arith.constant 0 : i32
    %c0_i32_1 = arith.constant 0 : i32
    return %c0_i32, %c0_i32_0 : i32, i32
  }
  func.func @transform_7(%arg0: i32, %arg1: memref<5xi32, #tpu.memory_space<smem>>) -> (i32, i32) {
    %c0_i32 = arith.constant 0 : i32
    %c0_i32_0 = arith.constant 0 : i32
    %c0_i32_1 = arith.constant 0 : i32
    return %c0_i32, %c0_i32_0 : i32, i32
  }
  func.func @transform_8(%arg0: i32, %arg1: memref<5xi32, #tpu.memory_space<smem>>) -> (i32, i32) {
    %c0_i32 = arith.constant 0 : i32
    %c0_i32_0 = arith.constant 0 : i32
    %c0_i32_1 = arith.constant 0 : i32
    return %c0_i32, %c0_i32_0 : i32, i32
  }
  func.func @transform_9(%arg0: i32, %arg1: memref<5xi32, #tpu.memory_space<smem>>) -> (i32, i32) {
    %c0_i32 = arith.constant 0 : i32
    %c0_i32_0 = arith.constant 0 : i32
    %c0_i32_1 = arith.constant 0 : i32
    return %c0_i32, %c0_i32_0 : i32, i32
  }
  func.func @transform_10(%arg0: i32, %arg1: memref<5xi32, #tpu.memory_space<smem>>) -> (i32, i32) {
    %c0_i32 = arith.constant 0 : i32
    %c0_i32_0 = arith.constant 0 : i32
    %c0_i32_1 = arith.constant 0 : i32
    return %c0_i32, %c0_i32_0 : i32, i32
  }
  func.func @transform_11(%arg0: i32, %arg1: memref<5xi32, #tpu.memory_space<smem>>) -> (i32, i32, i32) {
    %c0_i32 = arith.constant 0 : i32
    %c0_i32_0 = arith.constant 0 : i32
    %c0_i32_1 = arith.constant 0 : i32
    return %arg0, %c0_i32, %c0_i32_0 : i32, i32, i32
  }
}

</mosaic_0001>

<llo_original>
// kernel: _fused_decode.1
$region0: #{_fused_decode.1}
  #allocation0 [shape = 'u32[]', space=smem, size = 0x4, offset = 0x4, fixed_abs, tag = 'smem constant byte address 0x4 - core index']
  #allocation1 [shape = 'u32[144,128]{1,0:T(1,128)}', space=vmem, size = 0x12000, scoped, tag = 'internal scratch']
  #allocation2 [shape = 'f32[2,32]{1,0:T(2,128)}', space=vmem, size = 0x400, scoped, tag = 'scratch operand']
  #allocation3 [shape = 'f32[2,128]{1,0:T(2,128)}', space=vmem, size = 0x400, scoped, tag = 'scratch operand']
  #allocation4 [shape = 's32[1]{0}', space=sflag, size = 0x4, scoped, tag = 'scoped memory for _fused_decode.1']
  #allocation5 [shape = 'u8[512]{0}', space=smem, size = 0x200, scoped, tag = 'prefetched SMEM operand 0']
  %s0 = inlined_call_operand.vmem [shape: s32[5], index: 0, kind: input, shape index: {}]
  %s1 = inlined_call_operand.vmem [shape: f32[5,2,96], index: 1, kind: input, shape index: {}]
  %s2 = inlined_call_operand.vmem [shape: f32[2,32], index: 2, kind: input, shape index: {}]
  %s3 = inlined_call_operand.vmem [shape: f32[2,8,32], index: 3, kind: input, shape index: {}]
  %s4 = inlined_call_operand.vmem [shape: f32[2,8], index: 4, kind: input, shape index: {}]
  %s5 = inlined_call_operand.vmem [shape: f32[1,32], index: 5, kind: input, shape index: {}]
  %s6 = inlined_call_operand.vmem [shape: f32[128,96], index: 6, kind: input, shape index: {}]
  %s7 = inlined_call_operand.vmem [shape: f32[32,96], index: 7, kind: input, shape index: {}]
  %s8 = inlined_call_operand.vmem [shape: f32[32,96], index: 8, kind: input, shape index: {}]
  %s9 = inlined_call_operand.vmem [shape: f32[1,96], index: 9, kind: input, shape index: {}]
  %s10 = inlined_call_operand.vmem [shape: f32[32,128], index: 10, kind: input, shape index: {}]
  %s11 = inlined_call_operand.vmem [shape: f32[1,128], index: 11, kind: input, shape index: {}]
  %s12 = inlined_call_operand.vmem [shape: f32[5,2,128], index: 12, kind: output, shape index: {}]
  %s13 = sld [smem:[#allocation0]]
  $region81: #{_fused_decode.1} parent=0
    _
  %s15 = ssub.s32 1, %s13
  %s16 = scalar_select 0, %s15, %s13
  %s17 = sshll.u32 %s0, 4
  %s18 = int_to_ptr.vmem [resolvable:$true] %s17
  %20 = dma.vmem_to_smem %s18, 16, [#allocation5], [#allocation4]
  %21 = dma.done [#allocation4], 16
  %22 = sfence
  loop: start=0, step=1, limit=7
  $region2: #{_fused_decode.1} parent=0 // loop_pre_header
    _
  $region3: #{_fused_decode.1} parent=0 // loop_header
    %s24 = sphi 0, %s28
    %p25 = scmp.ge.s32.totalorder %s24, 7
    %s34 = sphi 0, %s36
    %s37 = sphi 0, %s34
    %s38 = sphi 0, %s37
    %s54 = sphi 0, %s38
    %s58 = sphi 0, %s58
    %s60 = sphi 0, %s58
    %s61 = sphi 0, %s60
    %s75 = sphi 0, %s61
    %s79 = sphi 0, %s79
    %s81 = sphi 0, %s79
    %s82 = sphi 0, %s81
    %s96 = sphi 0, %s82
    %s100 = sphi 0, %s100
    %s102 = sphi 0, %s100
    %s103 = sphi 0, %s102
    %s117 = sphi 0, %s103
    %s121 = sphi 0, %s121
    %s123 = sphi 0, %s121
    %s124 = sphi 0, %s123
    %s138 = sphi 0, %s124
    %s142 = sphi 0, %s142
    %s144 = sphi 0, %s142
    %s145 = sphi 0, %s144
    %s159 = sphi 0, %s145
    %s163 = sphi 0, %s163
    %s165 = sphi 0, %s163
    %s166 = sphi 0, %s165
    %s180 = sphi 0, %s166
    %s184 = sphi 0, %s184
    %s186 = sphi 0, %s184
    %s187 = sphi 0, %s186
    %s201 = sphi 0, %s187
    %s205 = sphi 0, %s205
    %s207 = sphi 0, %s205
    %s208 = sphi 0, %s207
    %s222 = sphi 0, %s208
    %s226 = sphi 0, %s226
    %s228 = sphi 0, %s226
    %s229 = sphi 0, %s228
    %s243 = sphi 0, %s229
    %s247 = sphi 0, %s247
    %s249 = sphi 0, %s247
    %s250 = sphi 0, %s249
    %s264 = sphi 0, %s250
    %s270 = sphi 0, %s272
    %s273 = sphi 0, %s270
    %s274 = sphi 0, %s273
    %s290 = sphi 0, %s274
  $region4: #{_fused_decode.1} parent=0 // loop_header_branch
    %27 = sbr.rel (%p25) target = $region8
  $region5: #{_fused_decode.1} parent=0 // loop_body
    %s29 = ssub.s32 %s24, 1
    %s30 = ssub.s32 %s24, 2
    %s31 = sadd.s32 %s24, 1
    %s32 = ssub.s32 %s24, %s31
    %p33 = scmp.eq.s32.totalorder %s32, 0
    %s35 = sadd.s32 %s34, 1
    %s36 = scalar_select %p33, %s34, %s35
    %p39 = pneg %p33
    %p40 = scmp.eq.s32.totalorder %s24, 4
    %p41 = por %p39, %p40
    %p42 = scmp.ne.s32.totalorder %s34, %s37
    %p43 = scmp.eq.s32.totalorder %s24, 0
    %p44 = por %p42, %p43
    %p45 = scmp.ne.s32.totalorder %s34, %s37
    %p46 = scmp.eq.s32.totalorder %s29, 4
    %p47 = por %p45, %p46
    %p48 = scmp.ne.s32.totalorder %s37, %s38
    %p49 = scmp.eq.s32.totalorder %s29, 0
    %p50 = por %p48, %p49
    %p51 = scmp.ne.s32.totalorder %s37, %s38
    %p52 = scmp.eq.s32.totalorder %s30, 4
    %p53 = por %p51, %p52
    %p55 = scmp.ne.s32.totalorder %s38, %s54
    %p56 = scmp.eq.s32.totalorder %s30, 0
    %p57 = por %p55, %p56
    %s59 = sadd.s32 %s58, 1
    %p62 = scmp.eq.s32.totalorder %s24, 4
    %p63 = scmp.ne.s32.totalorder %s58, %s60
    %p64 = scmp.eq.s32.totalorder %s24, 0
    %p65 = por %p63, %p64
    %p66 = scmp.ne.s32.totalorder %s58, %s60
    %p67 = scmp.eq.s32.totalorder %s29, 4
    %p68 = por %p66, %p67
    %p69 = scmp.ne.s32.totalorder %s60, %s61
    %p70 = scmp.eq.s32.totalorder %s29, 0
    %p71 = por %p69, %p70
    %p72 = scmp.ne.s32.totalorder %s60, %s61
    %p73 = scmp.eq.s32.totalorder %s30, 4
    %p74 = por %p72, %p73
    %p76 = scmp.ne.s32.totalorder %s61, %s75
    %p77 = scmp.eq.s32.totalorder %s30, 0
    %p78 = por %p76, %p77
    %s80 = sadd.s32 %s79, 1
    %p83 = scmp.eq.s32.totalorder %s24, 4
    %p84 = scmp.ne.s32.totalorder %s79, %s81
    %p85 = scmp.eq.s32.totalorder %s24, 0
    %p86 = por %p84, %p85
    %p87 = scmp.ne.s32.totalorder %s79, %s81
    %p88 = scmp.eq.s32.totalorder %s29, 4
    %p89 = por %p87, %p88
    %p90 = scmp.ne.s32.totalorder %s81, %s82
    %p91 = scmp.eq.s32.totalorder %s29, 0
    %p92 = por %p90, %p91
    %p93 = scmp.ne.s32.totalorder %s81, %s82
    %p94 = scmp.eq.s32.totalorder %s30, 4
    %p95 = por %p93, %p94
    %p97 = scmp.ne.s32.totalorder %s82, %s96
    %p98 = scmp.eq.s32.totalorder %s30, 0
    %p99 = por %p97, %p98
    %s101 = sadd.s32 %s100, 1
    %p104 = scmp.eq.s32.totalorder %s24, 4
    %p105 = scmp.ne.s32.totalorder %s100, %s102
    %p106 = scmp.eq.s32.totalorder %s24, 0
    %p107 = por %p105, %p106
    %p108 = scmp.ne.s32.totalorder %s100, %s102
    %p109 = scmp.eq.s32.totalorder %s29, 4
    %p110 = por %p108, %p109
    %p111 = scmp.ne.s32.totalorder %s102, %s103
    %p112 = scmp.eq.s32.totalorder %s29, 0
    %p113 = por %p111, %p112
    %p114 = scmp.ne.s32.totalorder %s102, %s103
    %p115 = scmp.eq.s32.totalorder %s30, 4
    %p116 = por %p114, %p115
    %p118 = scmp.ne.s32.totalorder %s103, %s117
    %p119 = scmp.eq.s32.totalorder %s30, 0
    %p120 = por %p118, %p119
    %s122 = sadd.s32 %s121, 1
    %p125 = scmp.eq.s32.totalorder %s24, 4
    %p126 = scmp.ne.s32.totalorder %s121, %s123
    %p127 = scmp.eq.s32.totalorder %s24, 0
    %p128 = por %p126, %p127
    %p129 = scmp.ne.s32.totalorder %s121, %s123
    %p130 = scmp.eq.s32.totalorder %s29, 4
    %p131 = por %p129, %p130
    %p132 = scmp.ne.s32.totalorder %s123, %s124
    %p133 = scmp.eq.s32.totalorder %s29, 0
    %p134 = por %p132, %p133
    %p135 = scmp.ne.s32.totalorder %s123, %s124
    %p136 = scmp.eq.s32.totalorder %s30, 4
    %p137 = por %p135, %p136
    %p139 = scmp.ne.s32.totalorder %s124, %s138
    %p140 = scmp.eq.s32.totalorder %s30, 0
    %p141 = por %p139, %p140
    %s143 = sadd.s32 %s142, 1
    %p146 = scmp.eq.s32.totalorder %s24, 4
    %p147 = scmp.ne.s32.totalorder %s142, %s144
    %p148 = scmp.eq.s32.totalorder %s24, 0
    %p149 = por %p147, %p148
    %p150 = scmp.ne.s32.totalorder %s142, %s144
    %p151 = scmp.eq.s32.totalorder %s29, 4
    %p152 = por %p150, %p151
    %p153 = scmp.ne.s32.totalorder %s144, %s145
    %p154 = scmp.eq.s32.totalorder %s29, 0
    %p155 = por %p153, %p154
    %p156 = scmp.ne.s32.totalorder %s144, %s145
    %p157 = scmp.eq.s32.totalorder %s30, 4
    %p158 = por %p156, %p157
    %p160 = scmp.ne.s32.totalorder %s145, %s159
    %p161 = scmp.eq.s32.totalorder %s30, 0
    %p162 = por %p160, %p161
    %s164 = sadd.s32 %s163, 1
    %p167 = scmp.eq.s32.totalorder %s24, 4
    %p168 = scmp.ne.s32.totalorder %s163, %s165
    %p169 = scmp.eq.s32.totalorder %s24, 0
    %p170 = por %p168, %p169
    %p171 = scmp.ne.s32.totalorder %s163, %s165
    %p172 = scmp.eq.s32.totalorder %s29, 4
    %p173 = por %p171, %p172
    %p174 = scmp.ne.s32.totalorder %s165, %s166
    %p175 = scmp.eq.s32.totalorder %s29, 0
    %p176 = por %p174, %p175
    %p177 = scmp.ne.s32.totalorder %s165, %s166
    %p178 = scmp.eq.s32.totalorder %s30, 4
    %p179 = por %p177, %p178
    %p181 = scmp.ne.s32.totalorder %s166, %s180
    %p182 = scmp.eq.s32.totalorder %s30, 0
    %p183 = por %p181, %p182
    %s185 = sadd.s32 %s184, 1
    %p188 = scmp.eq.s32.totalorder %s24, 4
    %p189 = scmp.ne.s32.totalorder %s184, %s186
    %p190 = scmp.eq.s32.totalorder %s24, 0
    %p191 = por %p189, %p190
    %p192 = scmp.ne.s32.totalorder %s184, %s186
    %p193 = scmp.eq.s32.totalorder %s29, 4
    %p194 = por %p192, %p193
    %p195 = scmp.ne.s32.totalorder %s186, %s187
    %p196 = scmp.eq.s32.totalorder %s29, 0
    %p197 = por %p195, %p196
    %p198 = scmp.ne.s32.totalorder %s186, %s187
    %p199 = scmp.eq.s32.totalorder %s30, 4
    %p200 = por %p198, %p199
    %p202 = scmp.ne.s32.totalorder %s187, %s201
    %p203 = scmp.eq.s32.totalorder %s30, 0
    %p204 = por %p202, %p203
    %s206 = sadd.s32 %s205, 1
    %p209 = scmp.eq.s32.totalorder %s24, 4
    %p210 = scmp.ne.s32.totalorder %s205, %s207
    %p211 = scmp.eq.s32.totalorder %s24, 0
    %p212 = por %p210, %p211
    %p213 = scmp.ne.s32.totalorder %s205, %s207
    %p214 = scmp.eq.s32.totalorder %s29, 4
    %p215 = por %p213, %p214
    %p216 = scmp.ne.s32.totalorder %s207, %s208
    %p217 = scmp.eq.s32.totalorder %s29, 0
    %p218 = por %p216, %p217
    %p219 = scmp.ne.s32.totalorder %s207, %s208
    %p220 = scmp.eq.s32.totalorder %s30, 4
    %p221 = por %p219, %p220
    %p223 = scmp.ne.s32.totalorder %s208, %s222
    %p224 = scmp.eq.s32.totalorder %s30, 0
    %p225 = por %p223, %p224
    %s227 = sadd.s32 %s226, 1
    %p230 = scmp.eq.s32.totalorder %s24, 4
    %p231 = scmp.ne.s32.totalorder %s226, %s228
    %p232 = scmp.eq.s32.totalorder %s24, 0
    %p233 = por %p231, %p232
    %p234 = scmp.ne.s32.totalorder %s226, %s228
    %p235 = scmp.eq.s32.totalorder %s29, 4
    %p236 = por %p234, %p235
    %p237 = scmp.ne.s32.totalorder %s228, %s229
    %p238 = scmp.eq.s32.totalorder %s29, 0
    %p239 = por %p237, %p238
    %p240 = scmp.ne.s32.totalorder %s228, %s229
    %p241 = scmp.eq.s32.totalorder %s30, 4
    %p242 = por %p240, %p241
    %p244 = scmp.ne.s32.totalorder %s229, %s243
    %p245 = scmp.eq.s32.totalorder %s30, 0
    %p246 = por %p244, %p245
    %s248 = sadd.s32 %s247, 1
    %p251 = scmp.eq.s32.totalorder %s24, 4
    %p252 = scmp.ne.s32.totalorder %s247, %s249
    %p253 = scmp.eq.s32.totalorder %s24, 0
    %p254 = por %p252, %p253
    %p255 = scmp.ne.s32.totalorder %s247, %s249
    %p256 = scmp.eq.s32.totalorder %s29, 4
    %p257 = por %p255, %p256
    %p258 = scmp.ne.s32.totalorder %s249, %s250
    %p259 = scmp.eq.s32.totalorder %s29, 0
    %p260 = por %p258, %p259
    %p261 = scmp.ne.s32.totalorder %s249, %s250
    %p262 = scmp.eq.s32.totalorder %s30, 4
    %p263 = por %p261, %p262
    %p265 = scmp.ne.s32.totalorder %s250, %s264
    %p266 = scmp.eq.s32.totalorder %s30, 0
    %p267 = por %p265, %p266
    %s268 = ssub.s32 %s24, %s31
    %p269 = scmp.eq.s32.totalorder %s268, 0
    %s271 = sadd.s32 %s270, 1
    %s272 = scalar_select %p269, %s270, %s271
    %p275 = pneg %p269
    %p276 = scmp.eq.s32.totalorder %s24, 4
    %p277 = por %p275, %p276
    %p278 = scmp.ne.s32.totalorder %s270, %s273
    %p279 = scmp.eq.s32.totalorder %s24, 0
    %p280 = por %p278, %p279
    %p281 = scmp.ne.s32.totalorder %s270, %s273
    %p282 = scmp.eq.s32.totalorder %s29, 4
    %p283 = por %p281, %p282
    %p284 = scmp.ne.s32.totalorder %s273, %s274
    %p285 = scmp.eq.s32.totalorder %s29, 0
    %p286 = por %p284, %p285
    %p287 = scmp.ne.s32.totalorder %s273, %s274
    %p288 = scmp.eq.s32.totalorder %s30, 4
    %p289 = por %p287, %p288
    %p291 = scmp.ne.s32.totalorder %s274, %s290
    %p292 = scmp.eq.s32.totalorder %s30, 0
    %p293 = por %p291, %p292
    %p294 = scmp.le.s32.totalorder 1, %s24
    %p295 = scmp.lt.s32.totalorder %s24, 6
    %p296 = pnand %p294, %p295
    %p297 = pneg %p296
    // Predicated region
    $region9: #{_fused_decode.1} parent=5 // pred_check
      _
    $region10: #{_fused_decode.1} parent=5 // pred_check_branch
      %299 = sbr.rel (%p296) target = $region12
    $region11: #{_fused_decode.1} parent=5 // pred_region
      %s300 = ssub.s32 %s24, 1
      // Predicated region
      $region13: #{_fused_decode.1} parent=11 // pred_check
        %p301 = pneg %p71
      $region14: #{_fused_decode.1} parent=11 // pred_check_branch
        %303 = sbr.rel (%p301) target = $region16
      $region15: #{_fused_decode.1} parent=11 // pred_region
        _
      $region16: #{_fused_decode.1} parent=11 // pred_fallthru
        _
      // Predicated region
      $region17: #{_fused_decode.1} parent=11 // pred_check
        %p304 = pneg %p92
      $region18: #{_fused_decode.1} parent=11 // pred_check_branch
        %306 = sbr.rel (%p304) target = $region20
      $region19: #{_fused_decode.1} parent=11 // pred_region
        _
      $region20: #{_fused_decode.1} parent=11 // pred_fallthru
        _
      // Predicated region
      $region21: #{_fused_decode.1} parent=11 // pred_check
        %p307 = pneg %p113
      $region22: #{_fused_decode.1} parent=11 // pred_check_branch
        %309 = sbr.rel (%p307) target = $region24
      $region23: #{_fused_decode.1} parent=11 // pred_region
        _
      $region24: #{_fused_decode.1} parent=11 // pred_fallthru
        _
      // Predicated region
      $region25: #{_fused_decode.1} parent=11 // pred_check
        %p310 = pneg %p134
      $region26: #{_fused_decode.1} parent=11 // pred_check_branch
        %312 = sbr.rel (%p310) target = $region28
      $region27: #{_fused_decode.1} parent=11 // pred_region
        _
      $region28: #{_fused_decode.1} parent=11 // pred_fallthru
        _
      // Predicated region
      $region29: #{_fused_decode.1} parent=11 // pred_check
        %p313 = pneg %p155
      $region30: #{_fused_decode.1} parent=11 // pred_check_branch
        %315 = sbr.rel (%p313) target = $region32
      $region31: #{_fused_decode.1} parent=11 // pred_region
        _
      $region32: #{_fused_decode.1} parent=11 // pred_fallthru
        _
      // Predicated region
      $region33: #{_fused_decode.1} parent=11 // pred_check
        %p316 = pneg %p176
      $region34: #{_fused_decode.1} parent=11 // pred_check_branch
        %318 = sbr.rel (%p316) target = $region36
      $region35: #{_fused_decode.1} parent=11 // pred_region
        _
      $region36: #{_fused_decode.1} parent=11 // pred_fallthru
        _
      // Predicated region
      $region37: #{_fused_decode.1} parent=11 // pred_check
        %p319 = pneg %p197
      $region38: #{_fused_decode.1} parent=11 // pred_check_branch
        %321 = sbr.rel (%p319) target = $region40
      $region39: #{_fused_decode.1} parent=11 // pred_region
        _
      $region40: #{_fused_decode.1} parent=11 // pred_fallthru
        _
      // Predicated region
      $region41: #{_fused_decode.1} parent=11 // pred_check
        %p322 = pneg %p218
      $region42: #{_fused_decode.1} parent=11 // pred_check_branch
        %324 = sbr.rel (%p322) target = $region44
      $region43: #{_fused_decode.1} parent=11 // pred_region
        _
      $region44: #{_fused_decode.1} parent=11 // pred_fallthru
        _
      // Predicated region
      $region45: #{_fused_decode.1} parent=11 // pred_check
        %p325 = pneg %p239
      $region46: #{_fused_decode.1} parent=11 // pred_check_branch
        %327 = sbr.rel (%p325) target = $region48
      $region47: #{_fused_decode.1} parent=11 // pred_region
        _
      $region48: #{_fused_decode.1} parent=11 // pred_fallthru
        _
      // Predicated region
      $region49: #{_fused_decode.1} parent=11 // pred_check
        %p328 = pneg %p260
      $region50: #{_fused_decode.1} parent=11 // pred_check_branch
        %330 = sbr.rel (%p328) target = $region52
      $region51: #{_fused_decode.1} parent=11 // pred_region
        _
      $region52: #{_fused_decode.1} parent=11 // pred_fallthru
        _
    $region12: #{_fused_decode.1} parent=5 // pred_fallthru
      _
    %p331 = scmp.lt.s32.totalorder %s24, 5
    // Predicated region
    $region53: #{_fused_decode.1} parent=5 // pred_check
      %p332 = pneg %p331
    $region54: #{_fused_decode.1} parent=5 // pred_check_branch
      %334 = sbr.rel (%p332) target = $region56
    $region55: #{_fused_decode.1} parent=5 // pred_region
      // Predicated region
      $region57: #{_fused_decode.1} parent=55 // pred_check
        %p335 = pneg %p44
      $region58: #{_fused_decode.1} parent=55 // pred_check_branch
        %337 = sbr.rel (%p335) target = $region60
      $region59: #{_fused_decode.1} parent=55 // pred_region
        %p338 = scmp.lt.s32.totalorder %s24, 4
        %s339 = scalar_select %p338, %s24, 4
        %s340 = smul.addr %s339, 2
        %s341 = scalar_lea.vmem %s1, %s340
      $region60: #{_fused_decode.1} parent=55 // pred_fallthru
        _
    $region56: #{_fused_decode.1} parent=5 // pred_fallthru
      _
    %p342 = scmp.le.s32.totalorder 1, %s24
    %p343 = scmp.lt.s32.totalorder %s24, 6
    %p344 = pnand %p342, %p343
    %p345 = pneg %p344
    // Predicated region
    $region61: #{_fused_decode.1} parent=5 // pred_check
      _
    $region62: #{_fused_decode.1} parent=5 // pred_check_branch
      %347 = sbr.rel (%p344) target = $region64
    $region63: #{_fused_decode.1} parent=5 // pred_region
      %s348 = ssub.s32 %s24, 1
      %p349 = scmp.lt.s32.totalorder %s29, 4
      %s350 = scalar_select %p349, %s29, 4
      %s351 = smul.addr %s350, 2
      %s352 = scalar_lea.vmem %s1, %s351
      %p353 = pneg %p50
      %p354 = pneg %p47
      %p355 = pneg %p71
      %p356 = pneg %p68
      %p357 = pneg %p92
      %p358 = pneg %p89
      %p359 = pneg %p113
      %p360 = pneg %p110
      %p361 = pneg %p134
      %p362 = pneg %p131
      %p363 = pneg %p155
      %p364 = pneg %p152
      %p365 = pneg %p176
      %p366 = pneg %p173
      %p367 = pneg %p197
      %p368 = pneg %p194
      %p369 = pneg %p218
      %p370 = pneg %p215
      %p371 = pneg %p239
      %p372 = pneg %p236
      %p373 = pneg %p260
      %p374 = pneg %p257
      %p375 = pneg %p286
      %p376 = pneg %p283
      %p377 = scmp.lt.s32.totalorder %s29, 4
      %s378 = scalar_select %p377, %s29, 4
      %s379 = smul.addr %s378, 2
      %s380 = scalar_lea.vmem %s12, %s379
      %p381 = scmp.lt.s32.totalorder %s29, 4
      %s382 = scalar_select %p381, %s29, 4
      %s383 = smul.addr %s382, 2
      %s384 = scalar_lea.vmem %s1, %s383
      %p385 = scmp.lt.s32.totalorder %s29, 4
      %s386 = scalar_select %p385, %s29, 4
      %s387 = smul.addr %s386, 2
      %s388 = scalar_lea.vmem %s12, %s387
      %v389 = vlaneseq
      %v390 = vand.u32 %v389, 127
      %p391 = scmp.eq.s32.totalorder %s29, 0
      // Predicated region
      $region65: #{_fused_decode.1} parent=63 // pred_check
        %p392 = pneg %p391
      $region66: #{_fused_decode.1} parent=63 // pred_check_branch
        %394 = sbr.rel (%p392) target = $region68
      $region67: #{_fused_decode.1} parent=63 // pred_region
        %v395 = vld [vmem:[%s2] sm:$0x3]
        %vm396 = vcmask 254976
        %397 = vst.msk [vmem:[#allocation2] sm:$0x3] %vm396, %v395
        %vm398 = vcmp.eq.s32.totalorder %v390, 1
        %v399 = vsel %vm398, 1, 0
        %v400 = vcvt.s32.f32 %v399
        %401 = vst [vmem:[#allocation3] sm:$0x3] %v400
      $region68: #{_fused_decode.1} parent=63 // pred_fallthru
        _
      %v402 = vld [vmem:[#allocation2] sm:$0x3]
      %v403 = vld [vmem:[%s5] sm:$0x1]
      %v405 = vlaneseq
      %v406 = vshrl.u32 %v405, 7
      %v407 = vsub.s32 0, %v406
      %v408 = vrot.slane %v403, %v407
      %v410 = vmul.f32 %v402, %v408
      %vm411 = vcmask 254976
      %v412 = vsel %vm411, %v410, 0.0
      %413 = vadd.xlane.f32.xlu0 %v412
      %v414 = vpop.xlane.xlu0 %413
      %v415 = vld [vmem:[%s4] sm:$0x3]
      %v416 = vadd.f32 %v415, %v414
      %vm417 = vcmask 58368
      %v418 = vsel %vm417, %v416, -inf
      %419 = vmax.xlane.f32.xlu0 %v418
      %v420 = vpop.xlane.xlu0 %419
      %v421 = vsub.f32 %v416, %v420
      %v422 = vmul.f32 %v421, 1.442695
      %v423 = vpow.pop %v422
      %v424 = vsel %vm417, %v423, 0.0
      %425 = vadd.xlane.f32.xlu0 %v424
      %v426 = vpop.xlane.xlu0 %425
      %v427 = vrcp.pop %v426
      %v428 = vmul.f32 %v423, %v427
      %v429 = vlaneseq
      %v430 = vshrl.u32 %v429, 7
      %v431 = vsub.s32 0, %v430
      %v432 = vrot.slane %v428, %v431
      %434 = vbcast.lane.b32.xlu0 %v432, 256
      %v435 = vpop.permute.xlu0 %434
      %v436 = vlaneseq
      %v437 = vshrl.u32 %v436, 7
      %v438 = vsub.s32 1, %v437
      %v439 = vrot.slane %v428, %v438
      %441 = vbcast.lane.b32.xlu0 %v439, 256
      %v442 = vpop.permute.xlu0 %441
      %v443 = vld [vmem:[%s3] sm:$0xff]
      %v444 = vld [vmem:[%s3 + $0x8] sm:$0xff]
      %v445 = vmul.f32 %v435, %v443
      %v446 = vmul.f32 %v442, %v444
      %vm447 = vcmask 261120
      %v448 = vsel %vm447, %v445, 0.0
      %v449 = vrot.slane %v448, 4
      %v450 = vadd.f32 %v448, %v449
      %v451 = vrot.slane %v450, 2
      %v452 = vadd.f32 %v450, %v451
      %v453 = vrot.slane %v452, 1
      %v454 = vadd.f32 %v452, %v453
      %v455 = vsel %vm447, %v446, 0.0
      %v456 = vrot.slane %v455, 4
      %v457 = vadd.f32 %v455, %v456
      %v458 = vrot.slane %v457, 2
      %v459 = vadd.f32 %v457, %v458
      %v460 = vrot.slane %v459, 1
      %v461 = vadd.f32 %v459, %v460
      %v462 = vld [vmem:[#allocation3] sm:$0x3]
      %v463 = vld [vmem:[%s6] sm:$0xff]
      %v464 = vld [vmem:[%s6 + $0x8] sm:$0xff]
      %v465 = vld [vmem:[%s6 + $0x10] sm:$0xff]
      %v466 = vld [vmem:[%s6 + $0x18] sm:$0xff]
      %v467 = vld [vmem:[%s6 + $0x20] sm:$0xff]
      %v468 = vld [vmem:[%s6 + $0x28] sm:$0xff]
      %v469 = vld [vmem:[%s6 + $0x30] sm:$0xff]
      %v470 = vld [vmem:[%s6 + $0x38] sm:$0xff]
      %v471 = vld [vmem:[%s6 + $0x40] sm:$0xff]
      %v472 = vld [vmem:[%s6 + $0x48] sm:$0xff]
      %v473 = vld [vmem:[%s6 + $0x50] sm:$0xff]
      %v474 = vld [vmem:[%s6 + $0x58] sm:$0xff]
      %v475 = vld [vmem:[%s6 + $0x60] sm:$0xff]
      %v476 = vld [vmem:[%s6 + $0x68] sm:$0xff]
      %v477 = vld [vmem:[%s6 + $0x70] sm:$0xff]
      %v478 = vld [vmem:[%s6 + $0x78] sm:$0xff]
      %479 = vmatprep.subr.mxu0 0.0
      %v480 = vand.u32 %v463, 4294901760
      %481 = vmatpush1.msra.mxu0 %v480
      %482 = vmatprep.subr.mxu0 0.0
      %v483 = vand.u32 %v464, 4294901760
      %484 = vmatpush1.msra.mxu0 %v483
      %485 = vmatprep.subr.mxu0 0.0
      %v486 = vand.u32 %v465, 4294901760
      %487 = vmatpush1.msra.mxu0 %v486
      %488 = vmatprep.subr.mxu0 0.0
      %v489 = vand.u32 %v466, 4294901760
      %490 = vmatpush1.msra.mxu0 %v489
      %491 = vmatprep.subr.mxu0 0.0
      %v492 = vand.u32 %v467, 4294901760
      %493 = vmatpush1.msra.mxu0 %v492
      %494 = vmatprep.subr.mxu0 0.0
      %v495 = vand.u32 %v468, 4294901760
      %496 = vmatpush1.msra.mxu0 %v495
      %497 = vmatprep.subr.mxu0 0.0
      %v498 = vand.u32 %v469, 4294901760
      %499 = vmatpush1.msra.mxu0 %v498
      %500 = vmatprep.subr.mxu0 0.0
      %v501 = vand.u32 %v470, 4294901760
      %502 = vmatpush1.msra.mxu0 %v501
      %503 = vmatprep.subr.mxu0 0.0
      %v504 = vand.u32 %v471, 4294901760
      %505 = vmatpush1.msra.mxu0 %v504
      %506 = vmatprep.subr.mxu0 0.0
      %v507 = vand.u32 %v472, 4294901760
      %508 = vmatpush1.msra.mxu0 %v507
      %509 = vmatprep.subr.mxu0 0.0
      %v510 = vand.u32 %v473, 4294901760
      %511 = vmatpush1.msra.mxu0 %v510
      %512 = vmatprep.subr.mxu0 0.0
      %v513 = vand.u32 %v474, 4294901760
      %514 = vmatpush1.msra.mxu0 %v513
      %515 = vmatprep.subr.mxu0 0.0
      %v516 = vand.u32 %v475, 4294901760
      %517 = vmatpush1.msra.mxu0 %v516
      %518 = vmatprep.subr.mxu0 0.0
      %v519 = vand.u32 %v476, 4294901760
      %520 = vmatpush1.msra.mxu0 %v519
      %521 = vmatprep.subr.mxu0 0.0
      %v522 = vand.u32 %v477, 4294901760
      %523 = vmatpush1.msra.mxu0 %v522
      %524 = vmatprep.subr.mxu0 0.0
      %v525 = vand.u32 %v478, 4294901760
      %526 = vmatpush1.msra.mxu0 %v525
      %527 = vmatprep.subr.mxu0 0.0
      %528 = vmatpush1.msra.mxu0 0.0
      %529 = vmatprep.subr.mxu0 0.0
      %530 = vmatpush1.msra.mxu0 0.0
      %531 = vmatprep.subr.mxu0 0.0
      %532 = vmatpush1.msra.mxu0 0.0
      %533 = vmatprep.subr.mxu0 0.0
      %534 = vmatpush1.msra.mxu0 0.0
      %535 = vmatprep.subr.mxu0 0.0
      %536 = vmatpush1.msra.mxu0 0.0
      %537 = vmatprep.subr.mxu0 0.0
      %538 = vmatpush1.msra.mxu0 0.0
      %539 = vmatprep.subr.mxu0 0.0
      %540 = vmatpush1.msra.mxu0 0.0
      %541 = vmatprep.subr.mxu0 0.0
      %542 = vmatpush1.msra.mxu0 0.0
      %543 = vmatprep.subr.mxu0 0.0
      %544 = vmatpush1.msra.mxu0 0.0
      %545 = vmatprep.subr.mxu0 0.0
      %546 = vmatpush1.msra.mxu0 0.0
      %547 = vmatprep.subr.mxu0 0.0
      %548 = vmatpush1.msra.mxu0 0.0
      %549 = vmatprep.subr.mxu0 0.0
      %550 = vmatpush1.msra.mxu0 0.0
      %551 = vmatprep.subr.mxu0 0.0
      %552 = vmatpush1.msra.mxu0 0.0
      %553 = vmatprep.subr.mxu0 0.0
      %554 = vmatpush1.msra.mxu0 0.0
      %555 = vmatprep.subr.mxu0 0.0
      %556 = vmatpush1.msra.mxu0 0.0
      %557 = vmatprep.subr.mxu0 0.0
      %558 = vmatpush1.msra.mxu0 0.0
      %559 = vmatprep.mubr.f32.mxu0 0.0
      %v560 = vand.u32 %v462, 4294901760
      %v561 = vsub.f32 %v462, %v560
      %v562 = vand.u32 %v561, 4294901760
      %v563 = vsub.f32 %v561, %v562
      %v564 = vand.u32 %v563, 4294901760
      %565 = vmatmul.mubr.f32.gmra.mrb[0].mxu0 %v564
      %v566 = vpop.f32.mrb[0].mxu0
      %v567 = vadd.f32 0.0, %v566
      %v568 = vpop.f32.mrb[0].mxu0
      %569 = vdwg.mxu0
      %570 = vmatprep.subr.mxu0 0.0
      %v571 = vand.u32 %v463, 4294901760
      %v572 = vsub.f32 %v463, %v571
      %v573 = vand.u32 %v572, 4294901760
      %v574 = vsub.f32 %v572, %v573
      %v575 = vand.u32 %v574, 4294901760
      %576 = vmatpush1.msra.mxu0 %v575
      %577 = vmatprep.subr.mxu0 0.0
      %v578 = vand.u32 %v464, 4294901760
      %v579 = vsub.f32 %v464, %v578
      %v580 = vand.u32 %v579, 4294901760
      %v581 = vsub.f32 %v579, %v580
      %v582 = vand.u32 %v581, 4294901760
      %583 = vmatpush1.msra.mxu0 %v582
      %584 = vmatprep.subr.mxu0 0.0
      %v585 = vand.u32 %v465, 4294901760
      %v586 = vsub.f32 %v465, %v585
      %v587 = vand.u32 %v586, 4294901760
      %v588 = vsub.f32 %v586, %v587
      %v589 = vand.u32 %v588, 4294901760
      %590 = vmatpush1.msra.mxu0 %v589
      %591 = vmatprep.subr.mxu0 0.0
      %v592 = vand.u32 %v466, 4294901760
      %v593 = vsub.f32 %v466, %v592
      %v594 = vand.u32 %v593, 4294901760
      %v595 = vsub.f32 %v593, %v594
      %v596 = vand.u32 %v595, 4294901760
      %597 = vmatpush1.msra.mxu0 %v596
      %598 = vmatprep.subr.mxu0 0.0
      %v599 = vand.u32 %v467, 4294901760
      %v600 = vsub.f32 %v467, %v599
      %v601 = vand.u32 %v600, 4294901760
      %v602 = vsub.f32 %v600, %v601
      %v603 = vand.u32 %v602, 4294901760
      %604 = vmatpush1.msra.mxu0 %v603
      %605 = vmatprep.subr.mxu0 0.0
      %v606 = vand.u32 %v468, 4294901760
      %v607 = vsub.f32 %v468, %v606
      %v608 = vand.u32 %v607, 4294901760
      %v609 = vsub.f32 %v607, %v608
      %v610 = vand.u32 %v609, 4294901760
      %611 = vmatpush1.msra.mxu0 %v610
      %612 = vmatprep.subr.mxu0 0.0
      %v613 = vand.u32 %v469, 4294901760
      %v614 = vsub.f32 %v469, %v613
      %v615 = vand.u32 %v614, 4294901760
      %v616 = vsub.f32 %v614, %v615
      %v617 = vand.u32 %v616, 4294901760
      %618 = vmatpush1.msra.mxu0 %v617
      %619 = vmatprep.subr.mxu0 0.0
      %v620 = vand.u32 %v470, 4294901760
      %v621 = vsub.f32 %v470, %v620
      %v622 = vand.u32 %v621, 4294901760
      %v623 = vsub.f32 %v621, %v622
      %v624 = vand.u32 %v623, 4294901760
      %625 = vmatpush1.msra.mxu0 %v624
      %626 = vmatprep.subr.mxu0 0.0
      %v627 = vand.u32 %v471, 4294901760
      %v628 = vsub.f32 %v471, %v627
      %v629 = vand.u32 %v628, 4294901760
      %v630 = vsub.f32 %v628, %v629
      %v631 = vand.u32 %v630, 4294901760
      %632 = vmatpush1.msra.mxu0 %v631
      %633 = vmatprep.subr.mxu0 0.0
      %v634 = vand.u32 %v472, 4294901760
      %v635 = vsub.f32 %v472, %v634
      %v636 = vand.u32 %v635, 4294901760
      %v637 = vsub.f32 %v635, %v636
      %v638 = vand.u32 %v637, 4294901760
      %639 = vmatpush1.msra.mxu0 %v638
      %640 = vmatprep.subr.mxu0 0.0
      %v641 = vand.u32 %v473, 4294901760
      %v642 = vsub.f32 %v473, %v641
      %v643 = vand.u32 %v642, 4294901760
      %v644 = vsub.f32 %v642, %v643
      %v645 = vand.u32 %v644, 4294901760
      %646 = vmatpush1.msra.mxu0 %v645
      %647 = vmatprep.subr.mxu0 0.0
      %v648 = vand.u32 %v474, 4294901760
      %v649 = vsub.f32 %v474, %v648
      %v650 = vand.u32 %v649, 4294901760
      %v651 = vsub.f32 %v649, %v650
      %v652 = vand.u32 %v651, 4294901760
      %653 = vmatpush1.msra.mxu0 %v652
      %654 = vmatprep.subr.mxu0 0.0
      %v655 = vand.u32 %v475, 4294901760
      %v656 = vsub.f32 %v475, %v655
      %v657 = vand.u32 %v656, 4294901760
      %v658 = vsub.f32 %v656, %v657
      %v659 = vand.u32 %v658, 4294901760
      %660 = vmatpush1.msra.mxu0 %v659
      %661 = vmatprep.subr.mxu0 0.0
      %v662 = vand.u32 %v476, 4294901760
      %v663 = vsub.f32 %v476, %v662
      %v664 = vand.u32 %v663, 4294901760
      %v665 = vsub.f32 %v663, %v664
      %v666 = vand.u32 %v665, 4294901760
      %667 = vmatpush1.msra.mxu0 %v666
      %668 = vmatprep.subr.mxu0 0.0
      %v669 = vand.u32 %v477, 4294901760
      %v670 = vsub.f32 %v477, %v669
      %v671 = vand.u32 %v670, 4294901760
      %v672 = vsub.f32 %v670, %v671
      %v673 = vand.u32 %v672, 4294901760
      %674 = vmatpush1.msra.mxu0 %v673
      %675 = vmatprep.subr.mxu0 0.0
      %v676 = vand.u32 %v478, 4294901760
      %v677 = vsub.f32 %v478, %v676
      %v678 = vand.u32 %v677, 4294901760
      %v679 = vsub.f32 %v677, %v678
      %v680 = vand.u32 %v679, 4294901760
      %681 = vmatpush1.msra.mxu0 %v680
      %682 = vmatprep.subr.mxu0 0.0
      %683 = vmatpush1.msra.mxu0 0.0
      %684 = vmatprep.subr.mxu0 0.0
      %685 = vmatpush1.msra.mxu0 0.0
      %686 = vmatprep.subr.mxu0 0.0
      %687 = vmatpush1.msra.mxu0 0.0
      %688 = vmatprep.subr.mxu0 0.0
      %689 = vmatpush1.msra.mxu0 0.0
      %690 = vmatprep.subr.mxu0 0.0
      %691 = vmatpush1.msra.mxu0 0.0
      %692 = vmatprep.subr.mxu0 0.0
      %693 = vmatpush1.msra.mxu0 0.0
      %694 = vmatprep.subr.mxu0 0.0
      %695 = vmatpush1.msra.mxu0 0.0
      %696 = vmatprep.subr.mxu0 0.0
      %697 = vmatpush1.msra.mxu0 0.0
      %698 = vmatprep.subr.mxu0 0.0
      %699 = vmatpush1.msra.mxu0 0.0
      %700 = vmatprep.subr.mxu0 0.0
      %701 = vmatpush1.msra.mxu0 0.0
      %702 = vmatprep.subr.mxu0 0.0
      %703 = vmatpush1.msra.mxu0 0.0
      %704 = vmatprep.subr.mxu0 0.0
      %705 = vmatpush1.msra.mxu0 0.0
      %706 = vmatprep.subr.mxu0 0.0
      %707 = vmatpush1.msra.mxu0 0.0
      %708 = vmatprep.subr.mxu0 0.0
      %709 = vmatpush1.msra.mxu0 0.0
      %710 = vmatprep.subr.mxu0 0.0
      %711 = vmatpush1.msra.mxu0 0.0
      %712 = vmatprep.subr.mxu0 0.0
      %713 = vmatpush1.msra.mxu0 0.0
      %714 = vmatprep.mubr.f32.mxu0 0.0
      %v715 = vand.u32 %v462, 4294901760
      %716 = vmatmul.mubr.f32.gmra.mrb[0].mxu0 %v715
      %v717 = vpop.f32.mrb[0].mxu0
      %v718 = vadd.f32 %v567, %v717
      %v719 = vpop.f32.mrb[0].mxu0
      %720 = vdwg.mxu0
      %721 = vmatprep.subr.mxu0 0.0
      %v722 = vand.u32 %v463, 4294901760
      %v723 = vsub.f32 %v463, %v722
      %724 = vmatpush1.msra.mxu0 %v723
      %725 = vmatprep.subr.mxu0 0.0
      %v726 = vand.u32 %v464, 4294901760
      %v727 = vsub.f32 %v464, %v726
      %728 = vmatpush1.msra.mxu0 %v727
      %729 = vmatprep.subr.mxu0 0.0
      %v730 = vand.u32 %v465, 4294901760
      %v731 = vsub.f32 %v465, %v730
      %732 = vmatpush1.msra.mxu0 %v731
      %733 = vmatprep.subr.mxu0 0.0
      %v734 = vand.u32 %v466, 4294901760
      %v735 = vsub.f32 %v466, %v734
      %736 = vmatpush1.msra.mxu0 %v735
      %737 = vmatprep.subr.mxu0 0.0
      %v738 = vand.u32 %v467, 4294901760
      %v739 = vsub.f32 %v467, %v738
      %740 = vmatpush1.msra.mxu0 %v739
      %741 = vmatprep.subr.mxu0 0.0
      %v742 = vand.u32 %v468, 4294901760
      %v743 = vsub.f32 %v468, %v742
      %744 = vmatpush1.msra.mxu0 %v743
      %745 = vmatprep.subr.mxu0 0.0
      %v746 = vand.u32 %v469, 4294901760
      %v747 = vsub.f32 %v469, %v746
      %748 = vmatpush1.msra.mxu0 %v747
      %749 = vmatprep.subr.mxu0 0.0
      %v750 = vand.u32 %v470, 4294901760
      %v751 = vsub.f32 %v470, %v750
      %752 = vmatpush1.msra.mxu0 %v751
      %753 = vmatprep.subr.mxu0 0.0
      %v754 = vand.u32 %v471, 4294901760
      %v755 = vsub.f32 %v471, %v754
      %756 = vmatpush1.msra.mxu0 %v755
      %757 = vmatprep.subr.mxu0 0.0
      %v758 = vand.u32 %v472, 4294901760
      %v759 = vsub.f32 %v472, %v758
      %760 = vmatpush1.msra.mxu0 %v759
      %761 = vmatprep.subr.mxu0 0.0
      %v762 = vand.u32 %v473, 4294901760
      %v763 = vsub.f32 %v473, %v762
      %764 = vmatpush1.msra.mxu0 %v763
      %765 = vmatprep.subr.mxu0 0.0
      %v766 = vand.u32 %v474, 4294901760
      %v767 = vsub.f32 %v474, %v766
      %768 = vmatpush1.msra.mxu0 %v767
      %769 = vmatprep.subr.mxu0 0.0
      %v770 = vand.u32 %v475, 4294901760
      %v771 = vsub.f32 %v475, %v770
      %772 = vmatpush1.msra.mxu0 %v771
      %773 = vmatprep.subr.mxu0 0.0
      %v774 = vand.u32 %v476, 4294901760
      %v775 = vsub.f32 %v476, %v774
      %776 = vmatpush1.msra.mxu0 %v775
      %777 = vmatprep.subr.mxu0 0.0
      %v778 = vand.u32 %v477, 4294901760
      %v779 = vsub.f32 %v477, %v778
      %780 = vmatpush1.msra.mxu0 %v779
      %781 = vmatprep.subr.mxu0 0.0
      %v782 = vand.u32 %v478, 4294901760
      %v783 = vsub.f32 %v478, %v782
      %784 = vmatpush1.msra.mxu0 %v783
      %785 = vmatprep.subr.mxu0 0.0
      %786 = vmatpush1.msra.mxu0 0.0
      %787 = vmatprep.subr.mxu0 0.0
      %788 = vmatpush1.msra.mxu0 0.0
      %789 = vmatprep.subr.mxu0 0.0
      %790 = vmatpush1.msra.mxu0 0.0
      %791 = vmatprep.subr.mxu0 0.0
      %792 = vmatpush1.msra.mxu0 0.0
      %793 = vmatprep.subr.mxu0 0.0
      %794 = vmatpush1.msra.mxu0 0.0
      %795 = vmatprep.subr.mxu0 0.0
      %796 = vmatpush1.msra.mxu0 0.0
      %797 = vmatprep.subr.mxu0 0.0
      %798 = vmatpush1.msra.mxu0 0.0
      %799 = vmatprep.subr.mxu0 0.0
      %800 = vmatpush1.msra.mxu0 0.0
      %801 = vmatprep.subr.mxu0 0.0
      %802 = vmatpush1.msra.mxu0 0.0
      %803 = vmatprep.subr.mxu0 0.0
      %804 = vmatpush1.msra.mxu0 0.0
      %805 = vmatprep.subr.mxu0 0.0
      %806 = vmatpush1.msra.mxu0 0.0
      %807 = vmatprep.subr.mxu0 0.0
      %808 = vmatpush1.msra.mxu0 0.0
      %809 = vmatprep.subr.mxu0 0.0
      %810 = vmatpush1.msra.mxu0 0.0
      %811 = vmatprep.subr.mxu0 0.0
      %812 = vmatpush1.msra.mxu0 0.0
      %813 = vmatprep.subr.mxu0 0.0
      %814 = vmatpush1.msra.mxu0 0.0
      %815 = vmatprep.subr.mxu0 0.0
      %816 = vmatpush1.msra.mxu0 0.0
      %817 = vmatprep.mubr.f32.mxu0 0.0
      %v818 = vand.u32 %v462, 4294901760
      %v819 = vsub.f32 %v462, %v818
      %820 = vmatmul.mubr.f32.gmra.mrb[0].mxu0 %v819
      %v821 = vpop.f32.mrb[0].mxu0
      %v822 = vadd.f32 %v718, %v821
      %v823 = vpop.f32.mrb[0].mxu0
      %824 = vdwg.mxu0
      %825 = vmatprep.subr.mxu0 0.0
      %v826 = vand.u32 %v463, 4294901760
      %827 = vmatpush1.msra.mxu0 %v826
      %828 = vmatprep.subr.mxu0 0.0
      %v829 = vand.u32 %v464, 4294901760
      %830 = vmatpush1.msra.mxu0 %v829
      %831 = vmatprep.subr.mxu0 0.0
      %v832 = vand.u32 %v465, 4294901760
      %833 = vmatpush1.msra.mxu0 %v832
      %834 = vmatprep.subr.mxu0 0.0
      %v835 = vand.u32 %v466, 4294901760
      %836 = vmatpush1.msra.mxu0 %v835
      %837 = vmatprep.subr.mxu0 0.0
      %v838 = vand.u32 %v467, 4294901760
      %839 = vmatpush1.msra.mxu0 %v838
      %840 = vmatprep.subr.mxu0 0.0
      %v841 = vand.u32 %v468, 4294901760
      %842 = vmatpush1.msra.mxu0 %v841
      %843 = vmatprep.subr.mxu0 0.0
      %v844 = vand.u32 %v469, 4294901760
      %845 = vmatpush1.msra.mxu0 %v844
      %846 = vmatprep.subr.mxu0 0.0
      %v847 = vand.u32 %v470, 4294901760
      %848 = vmatpush1.msra.mxu0 %v847
      %849 = vmatprep.subr.mxu0 0.0
      %v850 = vand.u32 %v471, 4294901760
      %851 = vmatpush1.msra.mxu0 %v850
      %852 = vmatprep.subr.mxu0 0.0
      %v853 = vand.u32 %v472, 4294901760
      %854 = vmatpush1.msra.mxu0 %v853
      %855 = vmatprep.subr.mxu0 0.0
      %v856 = vand.u32 %v473, 4294901760
      %857 = vmatpush1.msra.mxu0 %v856
      %858 = vmatprep.subr.mxu0 0.0
      %v859 = vand.u32 %v474, 4294901760
      %860 = vmatpush1.msra.mxu0 %v859
      %861 = vmatprep.subr.mxu0 0.0
      %v862 = vand.u32 %v475, 4294901760
      %863 = vmatpush1.msra.mxu0 %v862
      %864 = vmatprep.subr.mxu0 0.0
      %v865 = vand.u32 %v476, 4294901760
      %866 = vmatpush1.msra.mxu0 %v865
      %867 = vmatprep.subr.mxu0 0.0
      %v868 = vand.u32 %v477, 4294901760
      %869 = vmatpush1.msra.mxu0 %v868
      %870 = vmatprep.subr.mxu0 0.0
      %v871 = vand.u32 %v478, 4294901760
      %872 = vmatpush1.msra.mxu0 %v871
      %873 = vmatprep.subr.mxu0 0.0
      %874 = vmatpush1.msra.mxu0 0.0
      %875 = vmatprep.subr.mxu0 0.0
      %876 = vmatpush1.msra.mxu0 0.0
      %877 = vmatprep.subr.mxu0 0.0
      %878 = vmatpush1.msra.mxu0 0.0
      %879 = vmatprep.subr.mxu0 0.0
      %880 = vmatpush1.msra.mxu0 0.0
      %881 = vmatprep.subr.mxu0 0.0
      %882 = vmatpush1.msra.mxu0 0.0
      %883 = vmatprep.subr.mxu0 0.0
      %884 = vmatpush1.msra.mxu0 0.0
      %885 = vmatprep.subr.mxu0 0.0
      %886 = vmatpush1.msra.mxu0 0.0
      %887 = vmatprep.subr.mxu0 0.0
      %888 = vmatpush1.msra.mxu0 0.0
      %889 = vmatprep.subr.mxu0 0.0
      %890 = vmatpush1.msra.mxu0 0.0
      %891 = vmatprep.subr.mxu0 0.0
      %892 = vmatpush1.msra.mxu0 0.0
      %893 = vmatprep.subr.mxu0 0.0
      %894 = vmatpush1.msra.mxu0 0.0
      %895 = vmatprep.subr.mxu0 0.0
      %896 = vmatpush1.msra.mxu0 0.0
      %897 = vmatprep.subr.mxu0 0.0
      %898 = vmatpush1.msra.mxu0 0.0
      %899 = vmatprep.subr.mxu0 0.0
      %900 = vmatpush1.msra.mxu0 0.0
      %901 = vmatprep.subr.mxu0 0.0
      %902 = vmatpush1.msra.mxu0 0.0
      %903 = vmatprep.subr.mxu0 0.0
      %904 = vmatpush1.msra.mxu0 0.0
      %905 = vmatprep.mubr.f32.mxu0 0.0
      %v906 = vand.u32 %v462, 4294901760
      %v907 = vsub.f32 %v462, %v906
      %v908 = vand.u32 %v907, 4294901760
      %909 = vmatmul.mubr.f32.gmra.mrb[0].mxu0 %v908
      %v910 = vpop.f32.mrb[0].mxu0
      %v911 = vadd.f32 %v822, %v910
      %v912 = vpop.f32.mrb[0].mxu0
      %913 = vdwg.mxu0
      %914 = vmatprep.subr.mxu0 0.0
      %v915 = vand.u32 %v463, 4294901760
      %v916 = vsub.f32 %v463, %v915
      %v917 = vand.u32 %v916, 4294901760
      %918 = vmatpush1.msra.mxu0 %v917
      %919 = vmatprep.subr.mxu0 0.0
      %v920 = vand.u32 %v464, 4294901760
      %v921 = vsub.f32 %v464, %v920
      %v922 = vand.u32 %v921, 4294901760
      %923 = vmatpush1.msra.mxu0 %v922
      %924 = vmatprep.subr.mxu0 0.0
      %v925 = vand.u32 %v465, 4294901760
      %v926 = vsub.f32 %v465, %v925
      %v927 = vand.u32 %v926, 4294901760
      %928 = vmatpush1.msra.mxu0 %v927
      %929 = vmatprep.subr.mxu0 0.0
      %v930 = vand.u32 %v466, 4294901760
      %v931 = vsub.f32 %v466, %v930
      %v932 = vand.u32 %v931, 4294901760
      %933 = vmatpush1.msra.mxu0 %v932
      %934 = vmatprep.subr.mxu0 0.0
      %v935 = vand.u32 %v467, 4294901760
      %v936 = vsub.f32 %v467, %v935
      %v937 = vand.u32 %v936, 4294901760
      %938 = vmatpush1.msra.mxu0 %v937
      %939 = vmatprep.subr.mxu0 0.0
      %v940 = vand.u32 %v468, 4294901760
      %v941 = vsub.f32 %v468, %v940
      %v942 = vand.u32 %v941, 4294901760
      %943 = vmatpush1.msra.mxu0 %v942
      %944 = vmatprep.subr.mxu0 0.0
      %v945 = vand.u32 %v469, 4294901760
      %v946 = vsub.f32 %v469, %v945
      %v947 = vand.u32 %v946, 4294901760
      %948 = vmatpush1.msra.mxu0 %v947
      %949 = vmatprep.subr.mxu0 0.0
      %v950 = vand.u32 %v470, 4294901760
      %v951 = vsub.f32 %v470, %v950
      %v952 = vand.u32 %v951, 4294901760
      %953 = vmatpush1.msra.mxu0 %v952
      %954 = vmatprep.subr.mxu0 0.0
      %v955 = vand.u32 %v471, 4294901760
      %v956 = vsub.f32 %v471, %v955
      %v957 = vand.u32 %v956, 4294901760
      %958 = vmatpush1.msra.mxu0 %v957
      %959 = vmatprep.subr.mxu0 0.0
      %v960 = vand.u32 %v472, 4294901760
      %v961 = vsub.f32 %v472, %v960
      %v962 = vand.u32 %v961, 4294901760
      %963 = vmatpush1.msra.mxu0 %v962
      %964 = vmatprep.subr.mxu0 0.0
      %v965 = vand.u32 %v473, 4294901760
      %v966 = vsub.f32 %v473, %v965
      %v967 = vand.u32 %v966, 4294901760
      %968 = vmatpush1.msra.mxu0 %v967
      %969 = vmatprep.subr.mxu0 0.0
      %v970 = vand.u32 %v474, 4294901760
      %v971 = vsub.f32 %v474, %v970
      %v972 = vand.u32 %v971, 4294901760
      %973 = vmatpush1.msra.mxu0 %v972
      %974 = vmatprep.subr.mxu0 0.0
      %v975 = vand.u32 %v475, 4294901760
      %v976 = vsub.f32 %v475, %v975
      %v977 = vand.u32 %v976, 4294901760
      %978 = vmatpush1.msra.mxu0 %v977
      %979 = vmatprep.subr.mxu0 0.0
      %v980 = vand.u32 %v476, 4294901760
      %v981 = vsub.f32 %v476, %v980
      %v982 = vand.u32 %v981, 4294901760
      %983 = vmatpush1.msra.mxu0 %v982
      %984 = vmatprep.subr.mxu0 0.0
      %v985 = vand.u32 %v477, 4294901760
      %v986 = vsub.f32 %v477, %v985
      %v987 = vand.u32 %v986, 4294901760
      %988 = vmatpush1.msra.mxu0 %v987
      %989 = vmatprep.subr.mxu0 0.0
      %v990 = vand.u32 %v478, 4294901760
      %v991 = vsub.f32 %v478, %v990
      %v992 = vand.u32 %v991, 4294901760
      %993 = vmatpush1.msra.mxu0 %v992
      %994 = vmatprep.subr.mxu0 0.0
      %995 = vmatpush1.msra.mxu0 0.0
      %996 = vmatprep.subr.mxu0 0.0
      %997 = vmatpush1.msra.mxu0 0.0
      %998 = vmatprep.subr.mxu0 0.0
      %999 = vmatpush1.msra.mxu0 0.0
      %1000 = vmatprep.subr.mxu0 0.0
      %1001 = vmatpush1.msra.mxu0 0.0
      %1002 = vmatprep.subr.mxu0 0.0
      %1003 = vmatpush1.msra.mxu0 0.0
      %1004 = vmatprep.subr.mxu0 0.0
      %1005 = vmatpush1.msra.mxu0 0.0
      %1006 = vmatprep.subr.mxu0 0.0
      %1007 = vmatpush1.msra.mxu0 0.0
      %1008 = vmatprep.subr.mxu0 0.0
      %1009 = vmatpush1.msra.mxu0 0.0
      %1010 = vmatprep.subr.mxu0 0.0
      %1011 = vmatpush1.msra.mxu0 0.0
      %1012 = vmatprep.subr.mxu0 0.0
      %1013 = vmatpush1.msra.mxu0 0.0
      %1014 = vmatprep.subr.mxu0 0.0
      %1015 = vmatpush1.msra.mxu0 0.0
      %1016 = vmatprep.subr.mxu0 0.0
      %1017 = vmatpush1.msra.mxu0 0.0
      %1018 = vmatprep.subr.mxu0 0.0
      %1019 = vmatpush1.msra.mxu0 0.0
      %1020 = vmatprep.subr.mxu0 0.0
      %1021 = vmatpush1.msra.mxu0 0.0
      %1022 = vmatprep.subr.mxu0 0.0
      %1023 = vmatpush1.msra.mxu0 0.0
      %1024 = vmatprep.subr.mxu0 0.0
      %1025 = vmatpush1.msra.mxu0 0.0
      %1026 = vmatprep.mubr.f32.mxu0 0.0
      %v1027 = vand.u32 %v462, 4294901760
      %1028 = vmatmul.mubr.f32.gmra.mrb[0].mxu0 %v1027
      %v1029 = vpop.f32.mrb[0].mxu0
      %v1030 = vadd.f32 %v911, %v1029
      %v1031 = vpop.f32.mrb[0].mxu0
      %1032 = vdwg.mxu0
      %1033 = vmatprep.subr.mxu0 0.0
      %v1034 = vand.u32 %v463, 4294901760
      %1035 = vmatpush1.msra.mxu0 %v1034
      %1036 = vmatprep.subr.mxu0 0.0
      %v1037 = vand.u32 %v464, 4294901760
      %1038 = vmatpush1.msra.mxu0 %v1037
      %1039 = vmatprep.subr.mxu0 0.0
      %v1040 = vand.u32 %v465, 4294901760
      %1041 = vmatpush1.msra.mxu0 %v1040
      %1042 = vmatprep.subr.mxu0 0.0
      %v1043 = vand.u32 %v466, 4294901760
      %1044 = vmatpush1.msra.mxu0 %v1043
      %1045 = vmatprep.subr.mxu0 0.0
      %v1046 = vand.u32 %v467, 4294901760
      %1047 = vmatpush1.msra.mxu0 %v1046
      %1048 = vmatprep.subr.mxu0 0.0
      %v1049 = vand.u32 %v468, 4294901760
      %1050 = vmatpush1.msra.mxu0 %v1049
      %1051 = vmatprep.subr.mxu0 0.0
      %v1052 = vand.u32 %v469, 4294901760
      %1053 = vmatpush1.msra.mxu0 %v1052
      %1054 = vmatprep.subr.mxu0 0.0
      %v1055 = vand.u32 %v470, 4294901760
      %1056 = vmatpush1.msra.mxu0 %v1055
      %1057 = vmatprep.subr.mxu0 0.0
      %v1058 = vand.u32 %v471, 4294901760
      %1059 = vmatpush1.msra.mxu0 %v1058
      %1060 = vmatprep.subr.mxu0 0.0
      %v1061 = vand.u32 %v472, 4294901760
      %1062 = vmatpush1.msra.mxu0 %v1061
      %1063 = vmatprep.subr.mxu0 0.0
      %v1064 = vand.u32 %v473, 4294901760
      %1065 = vmatpush1.msra.mxu0 %v1064
      %1066 = vmatprep.subr.mxu0 0.0
      %v1067 = vand.u32 %v474, 4294901760
      %1068 = vmatpush1.msra.mxu0 %v1067
      %1069 = vmatprep.subr.mxu0 0.0
      %v1070 = vand.u32 %v475, 4294901760
      %1071 = vmatpush1.msra.mxu0 %v1070
      %1072 = vmatprep.subr.mxu0 0.0
      %v1073 = vand.u32 %v476, 4294901760
      %1074 = vmatpush1.msra.mxu0 %v1073
      %1075 = vmatprep.subr.mxu0 0.0
      %v1076 = vand.u32 %v477, 4294901760
      %1077 = vmatpush1.msra.mxu0 %v1076
      %1078 = vmatprep.subr.mxu0 0.0
      %v1079 = vand.u32 %v478, 4294901760
      %1080 = vmatpush1.msra.mxu0 %v1079
      %1081 = vmatprep.subr.mxu0 0.0
      %1082 = vmatpush1.msra.mxu0 0.0
      %1083 = vmatprep.subr.mxu0 0.0
      %1084 = vmatpush1.msra.mxu0 0.0
      %1085 = vmatprep.subr.mxu0 0.0
      %1086 = vmatpush1.msra.mxu0 0.0
      %1087 = vmatprep.subr.mxu0 0.0
      %1088 = vmatpush1.msra.mxu0 0.0
      %1089 = vmatprep.subr.mxu0 0.0
      %1090 = vmatpush1.msra.mxu0 0.0
      %1091 = vmatprep.subr.mxu0 0.0
      %1092 = vmatpush1.msra.mxu0 0.0
      %1093 = vmatprep.subr.mxu0 0.0
      %1094 = vmatpush1.msra.mxu0 0.0
      %1095 = vmatprep.subr.mxu0 0.0
      %1096 = vmatpush1.msra.mxu0 0.0
      %1097 = vmatprep.subr.mxu0 0.0
      %1098 = vmatpush1.msra.mxu0 0.0
      %1099 = vmatprep.subr.mxu0 0.0
      %1100 = vmatpush1.msra.mxu0 0.0
      %1101 = vmatprep.subr.mxu0 0.0
      %1102 = vmatpush1.msra.mxu0 0.0
      %1103 = vmatprep.subr.mxu0 0.0
      %1104 = vmatpush1.msra.mxu0 0.0
      %1105 = vmatprep.subr.mxu0 0.0
      %1106 = vmatpush1.msra.mxu0 0.0
      %1107 = vmatprep.subr.mxu0 0.0
      %1108 = vmatpush1.msra.mxu0 0.0
      %1109 = vmatprep.subr.mxu0 0.0
      %1110 = vmatpush1.msra.mxu0 0.0
      %1111 = vmatprep.subr.mxu0 0.0
      %1112 = vmatpush1.msra.mxu0 0.0
      %1113 = vmatprep.mubr.f32.mxu0 0.0
      %v1114 = vand.u32 %v462, 4294901760
      %1115 = vmatmul.mubr.f32.gmra.mrb[0].mxu0 %v1114
      %v1116 = vpop.f32.mrb[0].mxu0
      %v1117 = vadd.f32 %v1030, %v1116
      %v1118 = vpop.f32.mrb[0].mxu0
      %1119 = vdwg.mxu0
      %s1120 = sld [smem:[#allocation5 + %s29]]
      %p1121 = scmp.eq.s32.totalorder %s1120, 1
      %s1122 = scalar_select %p1121, 1, 0
      %s1123 = scvt.s32.f32 %s1122
      %v1124 = vld [vmem:[%s384] sm:$0x3]
      %v1125 = vstv %s1123
      %v1126 = vmul.f32 %v1125, %v1124
      %s1127 = ssub.f32 1.0, %s1123
      %v1128 = vstv %s1127
      %v1129 = vmul.f32 %v1128, %v1117
      %v1130 = vadd.f32 %v1126, %v1129
      %v1131 = vld [vmem:[%s7] sm:$0xff]
      %v1132 = vld [vmem:[%s7 + $0x8] sm:$0xff]
      %v1133 = vld [vmem:[%s7 + $0x10] sm:$0xff]
      %v1134 = vld [vmem:[%s7 + $0x18] sm:$0xff]
      %vm1137 = vcmask 1041409
      %v1138 = vsel %vm1137, %v461, %v454
      %v1139 = vsel %vm447, %v1138, 0
      %1141 = vmatprep.subr.mxu0 0.0
      %v1142 = vand.u32 %v1131, 4294901760
      %1143 = vmatpush1.msra.mxu0 %v1142
      %1144 = vmatprep.subr.mxu0 0.0
      %v1145 = vand.u32 %v1132, 4294901760
      %1146 = vmatpush1.msra.mxu0 %v1145
      %1147 = vmatprep.subr.mxu0 0.0
      %v1148 = vand.u32 %v1133, 4294901760
      %1149 = vmatpush1.msra.mxu0 %v1148
      %1150 = vmatprep.subr.mxu0 0.0
      %v1151 = vand.u32 %v1134, 4294901760
      %1152 = vmatpush1.msra.mxu0 %v1151
      %1153 = vmatprep.subr.mxu0 0.0
      %1154 = vmatpush1.msra.mxu0 0.0
      %1155 = vmatprep.subr.mxu0 0.0
      %1156 = vmatpush1.msra.mxu0 0.0
      %1157 = vmatprep.subr.mxu0 0.0
      %1158 = vmatpush1.msra.mxu0 0.0
      %1159 = vmatprep.subr.mxu0 0.0
      %1160 = vmatpush1.msra.mxu0 0.0
      %1161 = vmatprep.subr.mxu0 0.0
      %1162 = vmatpush1.msra.mxu0 0.0
      %1163 = vmatprep.subr.mxu0 0.0
      %1164 = vmatpush1.msra.mxu0 0.0
      %1165 = vmatprep.subr.mxu0 0.0
      %1166 = vmatpush1.msra.mxu0 0.0
      %1167 = vmatprep.subr.mxu0 0.0
      %1168 = vmatpush1.msra.mxu0 0.0
      %1169 = vmatprep.subr.mxu0 0.0
      %1170 = vmatpush1.msra.mxu0 0.0
      %1171 = vmatprep.subr.mxu0 0.0
      %1172 = vmatpush1.msra.mxu0 0.0
      %1173 = vmatprep.subr.mxu0 0.0
      %1174 = vmatpush1.msra.mxu0 0.0
      %1175 = vmatprep.subr.mxu0 0.0
      %1176 = vmatpush1.msra.mxu0 0.0
      %1177 = vmatprep.subr.mxu0 0.0
      %1178 = vmatpush1.msra.mxu0 0.0
      %1179 = vmatprep.subr.mxu0 0.0
      %1180 = vmatpush1.msra.mxu0 0.0
      %1181 = vmatprep.subr.mxu0 0.0
      %1182 = vmatpush1.msra.mxu0 0.0
      %1183 = vmatprep.subr.mxu0 0.0
      %1184 = vmatpush1.msra.mxu0 0.0
      %1185 = vmatprep.subr.mxu0 0.0
      %1186 = vmatpush1.msra.mxu0 0.0
      %1187 = vmatprep.subr.mxu0 0.0
      %1188 = vmatpush1.msra.mxu0 0.0
      %1189 = vmatprep.subr.mxu0 0.0
      %1190 = vmatpush1.msra.mxu0 0.0
      %1191 = vmatprep.subr.mxu0 0.0
      %1192 = vmatpush1.msra.mxu0 0.0
      %1193 = vmatprep.subr.mxu0 0.0
      %1194 = vmatpush1.msra.mxu0 0.0
      %1195 = vmatprep.subr.mxu0 0.0
      %1196 = vmatpush1.msra.mxu0 0.0
      %1197 = vmatprep.subr.mxu0 0.0
      %1198 = vmatpush1.msra.mxu0 0.0
      %1199 = vmatprep.subr.mxu0 0.0
      %1200 = vmatpush1.msra.mxu0 0.0
      %1201 = vmatprep.subr.mxu0 0.0
      %1202 = vmatpush1.msra.mxu0 0.0
      %1203 = vmatprep.subr.mxu0 0.0
      %1204 = vmatpush1.msra.mxu0 0.0
      %1205 = vmatprep.subr.mxu0 0.0
      %1206 = vmatpush1.msra.mxu0 0.0
      %1207 = vmatprep.subr.mxu0 0.0
      %1208 = vmatpush1.msra.mxu0 0.0
      %1209 = vmatprep.mubr.f32.mxu0 0.0
      %v1210 = vand.u32 %v1139, 4294901760
      %v1211 = vsub.f32 %v1139, %v1210
      %v1212 = vand.u32 %v1211, 4294901760
      %v1213 = vsub.f32 %v1211, %v1212
      %v1214 = vand.u32 %v1213, 4294901760
      %1215 = vmatmul.mubr.f32.gmra.mrb[0].mxu0 %v1214
      %v1216 = vpop.f32.mrb[0].mxu0
      %v1217 = vadd.f32 0.0, %v1216
      %v1218 = vpop.f32.mrb[0].mxu0
      %1219 = vdwg.mxu0
      %1220 = vmatprep.subr.mxu0 0.0
      %v1221 = vand.u32 %v1131, 4294901760
      %v1222 = vsub.f32 %v1131, %v1221
      %v1223 = vand.u32 %v1222, 4294901760
      %v1224 = vsub.f32 %v1222, %v1223
      %v1225 = vand.u32 %v1224, 4294901760
      %1226 = vmatpush1.msra.mxu0 %v1225
      %1227 = vmatprep.subr.mxu0 0.0
      %v1228 = vand.u32 %v1132, 4294901760
      %v1229 = vsub.f32 %v1132, %v1228
      %v1230 = vand.u32 %v1229, 4294901760
      %v1231 = vsub.f32 %v1229, %v1230
      %v1232 = vand.u32 %v1231, 4294901760
      %1233 = vmatpush1.msra.mxu0 %v1232
      %1234 = vmatprep.subr.mxu0 0.0
      %v1235 = vand.u32 %v1133, 4294901760
      %v1236 = vsub.f32 %v1133, %v1235
      %v1237 = vand.u32 %v1236, 4294901760
      %v1238 = vsub.f32 %v1236, %v1237
      %v1239 = vand.u32 %v1238, 4294901760
      %1240 = vmatpush1.msra.mxu0 %v1239
      %1241 = vmatprep.subr.mxu0 0.0
      %v1242 = vand.u32 %v1134, 4294901760
      %v1243 = vsub.f32 %v1134, %v1242
      %v1244 = vand.u32 %v1243, 4294901760
      %v1245 = vsub.f32 %v1243, %v1244
      %v1246 = vand.u32 %v1245, 4294901760
      %1247 = vmatpush1.msra.mxu0 %v1246
      %1248 = vmatprep.subr.mxu0 0.0
      %1249 = vmatpush1.msra.mxu0 0.0
      %1250 = vmatprep.subr.mxu0 0.0
      %1251 = vmatpush1.msra.mxu0 0.0
      %1252 = vmatprep.subr.mxu0 0.0
      %1253 = vmatpush1.msra.mxu0 0.0
      %1254 = vmatprep.subr.mxu0 0.0
      %1255 = vmatpush1.msra.mxu0 0.0
      %1256 = vmatprep.subr.mxu0 0.0
      %1257 = vmatpush1.msra.mxu0 0.0
      %1258 = vmatprep.subr.mxu0 0.0
      %1259 = vmatpush1.msra.mxu0 0.0
      %1260 = vmatprep.subr.mxu0 0.0
      %1261 = vmatpush1.msra.mxu0 0.0
      %1262 = vmatprep.subr.mxu0 0.0
      %1263 = vmatpush1.msra.mxu0 0.0
      %1264 = vmatprep.subr.mxu0 0.0
      %1265 = vmatpush1.msra.mxu0 0.0
      %1266 = vmatprep.subr.mxu0 0.0
      %1267 = vmatpush1.msra.mxu0 0.0
      %1268 = vmatprep.subr.mxu0 0.0
      %1269 = vmatpush1.msra.mxu0 0.0
      %1270 = vmatprep.subr.mxu0 0.0
      %1271 = vmatpush1.msra.mxu0 0.0
      %1272 = vmatprep.subr.mxu0 0.0
      %1273 = vmatpush1.msra.mxu0 0.0
      %1274 = vmatprep.subr.mxu0 0.0
      %1275 = vmatpush1.msra.mxu0 0.0
      %1276 = vmatprep.subr.mxu0 0.0
      %1277 = vmatpush1.msra.mxu0 0.0
      %1278 = vmatprep.subr.mxu0 0.0
      %1279 = vmatpush1.msra.mxu0 0.0
      %1280 = vmatprep.subr.mxu0 0.0
      %1281 = vmatpush1.msra.mxu0 0.0
      %1282 = vmatprep.subr.mxu0 0.0
      %1283 = vmatpush1.msra.mxu0 0.0
      %1284 = vmatprep.subr.mxu0 0.0
      %1285 = vmatpush1.msra.mxu0 0.0
      %1286 = vmatprep.subr.mxu0 0.0
      %1287 = vmatpush1.msra.mxu0 0.0
      %1288 = vmatprep.subr.mxu0 0.0
      %1289 = vmatpush1.msra.mxu0 0.0
      %1290 = vmatprep.subr.mxu0 0.0
      %1291 = vmatpush1.msra.mxu0 0.0
      %1292 = vmatprep.subr.mxu0 0.0
      %1293 = vmatpush1.msra.mxu0 0.0
      %1294 = vmatprep.subr.mxu0 0.0
      %1295 = vmatpush1.msra.mxu0 0.0
      %1296 = vmatprep.subr.mxu0 0.0
      %1297 = vmatpush1.msra.mxu0 0.0
      %1298 = vmatprep.subr.mxu0 0.0
      %1299 = vmatpush1.msra.mxu0 0.0
      %1300 = vmatprep.subr.mxu0 0.0
      %1301 = vmatpush1.msra.mxu0 0.0
      %1302 = vmatprep.subr.mxu0 0.0
      %1303 = vmatpush1.msra.mxu0 0.0
      %1304 = vmatprep.mubr.f32.mxu0 0.0
      %v1305 = vand.u32 %v1139, 4294901760
      %1306 = vmatmul.mubr.f32.gmra.mrb[0].mxu0 %v1305
      %v1307 = vpop.f32.mrb[0].mxu0
      %v1308 = vadd.f32 %v1217, %v1307
      %v1309 = vpop.f32.mrb[0].mxu0
      %1310 = vdwg.mxu0
      %1311 = vmatprep.subr.mxu0 0.0
      %v1312 = vand.u32 %v1131, 4294901760
      %v1313 = vsub.f32 %v1131, %v1312
      %1314 = vmatpush1.msra.mxu0 %v1313
      %1315 = vmatprep.subr.mxu0 0.0
      %v1316 = vand.u32 %v1132, 4294901760
      %v1317 = vsub.f32 %v1132, %v1316
      %1318 = vmatpush1.msra.mxu0 %v1317
      %1319 = vmatprep.subr.mxu0 0.0
      %v1320 = vand.u32 %v1133, 4294901760
      %v1321 = vsub.f32 %v1133, %v1320
      %1322 = vmatpush1.msra.mxu0 %v1321
      %1323 = vmatprep.subr.mxu0 0.0
      %v1324 = vand.u32 %v1134, 4294901760
      %v1325 = vsub.f32 %v1134, %v1324
      %1326 = vmatpush1.msra.mxu0 %v1325
      %1327 = vmatprep.subr.mxu0 0.0
      %1328 = vmatpush1.msra.mxu0 0.0
      %1329 = vmatprep.subr.mxu0 0.0
      %1330 = vmatpush1.msra.mxu0 0.0
      %1331 = vmatprep.subr.mxu0 0.0
      %1332 = vmatpush1.msra.mxu0 0.0
      %1333 = vmatprep.subr.mxu0 0.0
      %1334 = vmatpush1.msra.mxu0 0.0
      %1335 = vmatprep.subr.mxu0 0.0
      %1336 = vmatpush1.msra.mxu0 0.0
      %1337 = vmatprep.subr.mxu0 0.0
      %1338 = vmatpush1.msra.mxu0 0.0
      %1339 = vmatprep.subr.mxu0 0.0
      %1340 = vmatpush1.msra.mxu0 0.0
      %1341 = vmatprep.subr.mxu0 0.0
      %1342 = vmatpush1.msra.mxu0 0.0
      %1343 = vmatprep.subr.mxu0 0.0
      %1344 = vmatpush1.msra.mxu0 0.0
      %1345 = vmatprep.subr.mxu0 0.0
      %1346 = vmatpush1.msra.mxu0 0.0
      %1347 = vmatprep.subr.mxu0 0.0
      %1348 = vmatpush1.msra.mxu0 0.0
      %1349 = vmatprep.subr.mxu0 0.0
      %1350 = vmatpush1.msra.mxu0 0.0
      %1351 = vmatprep.subr.mxu0 0.0
      %1352 = vmatpush1.msra.mxu0 0.0
      %1353 = vmatprep.subr.mxu0 0.0
      %1354 = vmatpush1.msra.mxu0 0.0
      %1355 = vmatprep.subr.mxu0 0.0
      %1356 = vmatpush1.msra.mxu0 0.0
      %1357 = vmatprep.subr.mxu0 0.0
      %1358 = vmatpush1.msra.mxu0 0.0
      %1359 = vmatprep.subr.mxu0 0.0
      %1360 = vmatpush1.msra.mxu0 0.0
      %1361 = vmatprep.subr.mxu0 0.0
      %1362 = vmatpush1.msra.mxu0 0.0
      %1363 = vmatprep.subr.mxu0 0.0
      %1364 = vmatpush1.msra.mxu0 0.0
      %1365 = vmatprep.subr.mxu0 0.0
      %1366 = vmatpush1.msra.mxu0 0.0
      %1367 = vmatprep.subr.mxu0 0.0
      %1368 = vmatpush1.msra.mxu0 0.0
      %1369 = vmatprep.subr.mxu0 0.0
      %1370 = vmatpush1.msra.mxu0 0.0
      %1371 = vmatprep.subr.mxu0 0.0
      %1372 = vmatpush1.msra.mxu0 0.0
      %1373 = vmatprep.subr.mxu0 0.0
      %1374 = vmatpush1.msra.mxu0 0.0
      %1375 = vmatprep.subr.mxu0 0.0
      %1376 = vmatpush1.msra.mxu0 0.0
      %1377 = vmatprep.subr.mxu0 0.0
      %1378 = vmatpush1.msra.mxu0 0.0
      %1379 = vmatprep.subr.mxu0 0.0
      %1380 = vmatpush1.msra.mxu0 0.0
      %1381 = vmatprep.subr.mxu0 0.0
      %1382 = vmatpush1.msra.mxu0 0.0
      %1383 = vmatprep.mubr.f32.mxu0 0.0
      %v1384 = vand.u32 %v1139, 4294901760
      %v1385 = vsub.f32 %v1139, %v1384
      %1386 = vmatmul.mubr.f32.gmra.mrb[0].mxu0 %v1385
      %v1387 = vpop.f32.mrb[0].mxu0
      %v1388 = vadd.f32 %v1308, %v1387
      %v1389 = vpop.f32.mrb[0].mxu0
      %1390 = vdwg.mxu0
      %1391 = vmatprep.subr.mxu0 0.0
      %v1392 = vand.u32 %v1131, 4294901760
      %1393 = vmatpush1.msra.mxu0 %v1392
      %1394 = vmatprep.subr.mxu0 0.0
      %v1395 = vand.u32 %v1132, 4294901760
      %1396 = vmatpush1.msra.mxu0 %v1395
      %1397 = vmatprep.subr.mxu0 0.0
      %v1398 = vand.u32 %v1133, 4294901760
      %1399 = vmatpush1.msra.mxu0 %v1398
      %1400 = vmatprep.subr.mxu0 0.0
      %v1401 = vand.u32 %v1134, 4294901760
      %1402 = vmatpush1.msra.mxu0 %v1401
      %1403 = vmatprep.subr.mxu0 0.0
      %1404 = vmatpush1.msra.mxu0 0.0
      %1405 = vmatprep.subr.mxu0 0.0
      %1406 = vmatpush1.msra.mxu0 0.0
      %1407 = vmatprep.subr.mxu0 0.0
      %1408 = vmatpush1.msra.mxu0 0.0
      %1409 = vmatprep.subr.mxu0 0.0
      %1410 = vmatpush1.msra.mxu0 0.0
      %1411 = vmatprep.subr.mxu0 0.0
      %1412 = vmatpush1.msra.mxu0 0.0
      %1413 = vmatprep.subr.mxu0 0.0
      %1414 = vmatpush1.msra.mxu0 0.0
      %1415 = vmatprep.subr.mxu0 0.0
      %1416 = vmatpush1.msra.mxu0 0.0
      %1417 = vmatprep.subr.mxu0 0.0
      %1418 = vmatpush1.msra.mxu0 0.0
      %1419 = vmatprep.subr.mxu0 0.0
      %1420 = vmatpush1.msra.mxu0 0.0
      %1421 = vmatprep.subr.mxu0 0.0
      %1422 = vmatpush1.msra.mxu0 0.0
      %1423 = vmatprep.subr.mxu0 0.0
      %1424 = vmatpush1.msra.mxu0 0.0
      %1425 = vmatprep.subr.mxu0 0.0
      %1426 = vmatpush1.msra.mxu0 0.0
      %1427 = vmatprep.subr.mxu0 0.0
      %1428 = vmatpush1.msra.mxu0 0.0
      %1429 = vmatprep.subr.mxu0 0.0
      %1430 = vmatpush1.msra.mxu0 0.0
      %1431 = vmatprep.subr.mxu0 0.0
      %1432 = vmatpush1.msra.mxu0 0.0
      %1433 = vmatprep.subr.mxu0 0.0
      %1434 = vmatpush1.msra.mxu0 0.0
      %1435 = vmatprep.subr.mxu0 0.0
      %1436 = vmatpush1.msra.mxu0 0.0
      %1437 = vmatprep.subr.mxu0 0.0
      %1438 = vmatpush1.msra.mxu0 0.0
      %1439 = vmatprep.subr.mxu0 0.0
      %1440 = vmatpush1.msra.mxu0 0.0
      %1441 = vmatprep.subr.mxu0 0.0
      %1442 = vmatpush1.msra.mxu0 0.0
      %1443 = vmatprep.subr.mxu0 0.0
      %1444 = vmatpush1.msra.mxu0 0.0
      %1445 = vmatprep.subr.mxu0 0.0
      %1446 = vmatpush1.msra.mxu0 0.0
      %1447 = vmatprep.subr.mxu0 0.0
      %1448 = vmatpush1.msra.mxu0 0.0
      %1449 = vmatprep.subr.mxu0 0.0
      %1450 = vmatpush1.msra.mxu0 0.0
      %1451 = vmatprep.subr.mxu0 0.0
      %1452 = vmatpush1.msra.mxu0 0.0
      %1453 = vmatprep.subr.mxu0 0.0
      %1454 = vmatpush1.msra.mxu0 0.0
      %1455 = vmatprep.subr.mxu0 0.0
      %1456 = vmatpush1.msra.mxu0 0.0
      %1457 = vmatprep.subr.mxu0 0.0
      %1458 = vmatpush1.msra.mxu0 0.0
      %1459 = vmatprep.mubr.f32.mxu0 0.0
      %v1460 = vand.u32 %v1139, 4294901760
      %v1461 = vsub.f32 %v1139, %v1460
      %v1462 = vand.u32 %v1461, 4294901760
      %1463 = vmatmul.mubr.f32.gmra.mrb[0].mxu0 %v1462
      %v1464 = vpop.f32.mrb[0].mxu0
      %v1465 = vadd.f32 %v1388, %v1464
      %v1466 = vpop.f32.mrb[0].mxu0
      %1467 = vdwg.mxu0
      %1468 = vmatprep.subr.mxu0 0.0
      %v1469 = vand.u32 %v1131, 4294901760
      %v1470 = vsub.f32 %v1131, %v1469
      %v1471 = vand.u32 %v1470, 4294901760
      %1472 = vmatpush1.msra.mxu0 %v1471
      %1473 = vmatprep.subr.mxu0 0.0
      %v1474 = vand.u32 %v1132, 4294901760
      %v1475 = vsub.f32 %v1132, %v1474
      %v1476 = vand.u32 %v1475, 4294901760
      %1477 = vmatpush1.msra.mxu0 %v1476
      %1478 = vmatprep.subr.mxu0 0.0
      %v1479 = vand.u32 %v1133, 4294901760
      %v1480 = vsub.f32 %v1133, %v1479
      %v1481 = vand.u32 %v1480, 4294901760
      %1482 = vmatpush1.msra.mxu0 %v1481
      %1483 = vmatprep.subr.mxu0 0.0
      %v1484 = vand.u32 %v1134, 4294901760
      %v1485 = vsub.f32 %v1134, %v1484
      %v1486 = vand.u32 %v1485, 4294901760
      %1487 = vmatpush1.msra.mxu0 %v1486
      %1488 = vmatprep.subr.mxu0 0.0
      %1489 = vmatpush1.msra.mxu0 0.0
      %1490 = vmatprep.subr.mxu0 0.0
      %1491 = vmatpush1.msra.mxu0 0.0
      %1492 = vmatprep.subr.mxu0 0.0
      %1493 = vmatpush1.msra.mxu0 0.0
      %1494 = vmatprep.subr.mxu0 0.0
      %1495 = vmatpush1.msra.mxu0 0.0
      %1496 = vmatprep.subr.mxu0 0.0
      %1497 = vmatpush1.msra.mxu0 0.0
      %1498 = vmatprep.subr.mxu0 0.0
      %1499 = vmatpush1.msra.mxu0 0.0
      %1500 = vmatprep.subr.mxu0 0.0
      %1501 = vmatpush1.msra.mxu0 0.0
      %1502 = vmatprep.subr.mxu0 0.0
      %1503 = vmatpush1.msra.mxu0 0.0
      %1504 = vmatprep.subr.mxu0 0.0
      %1505 = vmatpush1.msra.mxu0 0.0
      %1506 = vmatprep.subr.mxu0 0.0
      %1507 = vmatpush1.msra.mxu0 0.0
      %1508 = vmatprep.subr.mxu0 0.0
      %1509 = vmatpush1.msra.mxu0 0.0
      %1510 = vmatprep.subr.mxu0 0.0
      %1511 = vmatpush1.msra.mxu0 0.0
      %1512 = vmatprep.subr.mxu0 0.0
      %1513 = vmatpush1.msra.mxu0 0.0
      %1514 = vmatprep.subr.mxu0 0.0
      %1515 = vmatpush1.msra.mxu0 0.0
      %1516 = vmatprep.subr.mxu0 0.0
      %1517 = vmatpush1.msra.mxu0 0.0
      %1518 = vmatprep.subr.mxu0 0.0
      %1519 = vmatpush1.msra.mxu0 0.0
      %1520 = vmatprep.subr.mxu0 0.0
      %1521 = vmatpush1.msra.mxu0 0.0
      %1522 = vmatprep.subr.mxu0 0.0
      %1523 = vmatpush1.msra.mxu0 0.0
      %1524 = vmatprep.subr.mxu0 0.0
      %1525 = vmatpush1.msra.mxu0 0.0
      %1526 = vmatprep.subr.mxu0 0.0
      %1527 = vmatpush1.msra.mxu0 0.0
      %1528 = vmatprep.subr.mxu0 0.0
      %1529 = vmatpush1.msra.mxu0 0.0
      %1530 = vmatprep.subr.mxu0 0.0
      %1531 = vmatpush1.msra.mxu0 0.0
      %1532 = vmatprep.subr.mxu0 0.0
      %1533 = vmatpush1.msra.mxu0 0.0
      %1534 = vmatprep.subr.mxu0 0.0
      %1535 = vmatpush1.msra.mxu0 0.0
      %1536 = vmatprep.subr.mxu0 0.0
      %1537 = vmatpush1.msra.mxu0 0.0
      %1538 = vmatprep.subr.mxu0 0.0
      %1539 = vmatpush1.msra.mxu0 0.0
      %1540 = vmatprep.subr.mxu0 0.0
      %1541 = vmatpush1.msra.mxu0 0.0
      %1542 = vmatprep.subr.mxu0 0.0
      %1543 = vmatpush1.msra.mxu0 0.0
      %1544 = vmatprep.mubr.f32.mxu0 0.0
      %v1545 = vand.u32 %v1139, 4294901760
      %1546 = vmatmul.mubr.f32.gmra.mrb[0].mxu0 %v1545
      %v1547 = vpop.f32.mrb[0].mxu0
      %v1548 = vadd.f32 %v1465, %v1547
      %v1549 = vpop.f32.mrb[0].mxu0
      %1550 = vdwg.mxu0
      %1551 = vmatprep.subr.mxu0 0.0
      %v1552 = vand.u32 %v1131, 4294901760
      %1553 = vmatpush1.msra.mxu0 %v1552
      %1554 = vmatprep.subr.mxu0 0.0
      %v1555 = vand.u32 %v1132, 4294901760
      %1556 = vmatpush1.msra.mxu0 %v1555
      %1557 = vmatprep.subr.mxu0 0.0
      %v1558 = vand.u32 %v1133, 4294901760
      %1559 = vmatpush1.msra.mxu0 %v1558
      %1560 = vmatprep.subr.mxu0 0.0
      %v1561 = vand.u32 %v1134, 4294901760
      %1562 = vmatpush1.msra.mxu0 %v1561
      %1563 = vmatprep.subr.mxu0 0.0
      %1564 = vmatpush1.msra.mxu0 0.0
      %1565 = vmatprep.subr.mxu0 0.0
      %1566 = vmatpush1.msra.mxu0 0.0
      %1567 = vmatprep.subr.mxu0 0.0
      %1568 = vmatpush1.msra.mxu0 0.0
      %1569 = vmatprep.subr.mxu0 0.0
      %1570 = vmatpush1.msra.mxu0 0.0
      %1571 = vmatprep.subr.mxu0 0.0
      %1572 = vmatpush1.msra.mxu0 0.0
      %1573 = vmatprep.subr.mxu0 0.0
      %1574 = vmatpush1.msra.mxu0 0.0
      %1575 = vmatprep.subr.mxu0 0.0
      %1576 = vmatpush1.msra.mxu0 0.0
      %1577 = vmatprep.subr.mxu0 0.0
      %1578 = vmatpush1.msra.mxu0 0.0
      %1579 = vmatprep.subr.mxu0 0.0
      %1580 = vmatpush1.msra.mxu0 0.0
      %1581 = vmatprep.subr.mxu0 0.0
      %1582 = vmatpush1.msra.mxu0 0.0
      %1583 = vmatprep.subr.mxu0 0.0
      %1584 = vmatpush1.msra.mxu0 0.0
      %1585 = vmatprep.subr.mxu0 0.0
      %1586 = vmatpush1.msra.mxu0 0.0
      %1587 = vmatprep.subr.mxu0 0.0
      %1588 = vmatpush1.msra.mxu0 0.0
      %1589 = vmatprep.subr.mxu0 0.0
      %1590 = vmatpush1.msra.mxu0 0.0
      %1591 = vmatprep.subr.mxu0 0.0
      %1592 = vmatpush1.msra.mxu0 0.0
      %1593 = vmatprep.subr.mxu0 0.0
      %1594 = vmatpush1.msra.mxu0 0.0
      %1595 = vmatprep.subr.mxu0 0.0
      %1596 = vmatpush1.msra.mxu0 0.0
      %1597 = vmatprep.subr.mxu0 0.0
      %1598 = vmatpush1.msra.mxu0 0.0
      %1599 = vmatprep.subr.mxu0 0.0
      %1600 = vmatpush1.msra.mxu0 0.0
      %1601 = vmatprep.subr.mxu0 0.0
      %1602 = vmatpush1.msra.mxu0 0.0
      %1603 = vmatprep.subr.mxu0 0.0
      %1604 = vmatpush1.msra.mxu0 0.0
      %1605 = vmatprep.subr.mxu0 0.0
      %1606 = vmatpush1.msra.mxu0 0.0
      %1607 = vmatprep.subr.mxu0 0.0
      %1608 = vmatpush1.msra.mxu0 0.0
      %1609 = vmatprep.subr.mxu0 0.0
      %1610 = vmatpush1.msra.mxu0 0.0
      %1611 = vmatprep.subr.mxu0 0.0
      %1612 = vmatpush1.msra.mxu0 0.0
      %1613 = vmatprep.subr.mxu0 0.0
      %1614 = vmatpush1.msra.mxu0 0.0
      %1615 = vmatprep.subr.mxu0 0.0
      %1616 = vmatpush1.msra.mxu0 0.0
      %1617 = vmatprep.subr.mxu0 0.0
      %1618 = vmatpush1.msra.mxu0 0.0
      %1619 = vmatprep.mubr.f32.mxu0 0.0
      %v1620 = vand.u32 %v1139, 4294901760
      %1621 = vmatmul.mubr.f32.gmra.mrb[0].mxu0 %v1620
      %v1622 = vpop.f32.mrb[0].mxu0
      %v1623 = vadd.f32 %v1548, %v1622
      %v1624 = vpop.f32.mrb[0].mxu0
      %1625 = vdwg.mxu0
      %v1626 = vadd.f32 %v1130, %v1623
      %v1627 = vld [vmem:[%s8] sm:$0xff]
      %v1628 = vld [vmem:[%s8 + $0x8] sm:$0xff]
      %v1629 = vld [vmem:[%s8 + $0x10] sm:$0xff]
      %v1630 = vld [vmem:[%s8 + $0x18] sm:$0xff]
      %v1632 = vsel %vm447, %v402, 0
      %1634 = vmatprep.subr.mxu0 0.0
      %v1635 = vand.u32 %v1627, 4294901760
      %1636 = vmatpush1.msra.mxu0 %v1635
      %1637 = vmatprep.subr.mxu0 0.0
      %v1638 = vand.u32 %v1628, 4294901760
      %1639 = vmatpush1.msra.mxu0 %v1638
      %1640 = vmatprep.subr.mxu0 0.0
      %v1641 = vand.u32 %v1629, 4294901760
      %1642 = vmatpush1.msra.mxu0 %v1641
      %1643 = vmatprep.subr.mxu0 0.0
      %v1644 = vand.u32 %v1630, 4294901760
      %1645 = vmatpush1.msra.mxu0 %v1644
      %1646 = vmatprep.subr.mxu0 0.0
      %1647 = vmatpush1.msra.mxu0 0.0
      %1648 = vmatprep.subr.mxu0 0.0
      %1649 = vmatpush1.msra.mxu0 0.0
      %1650 = vmatprep.subr.mxu0 0.0
      %1651 = vmatpush1.msra.mxu0 0.0
      %1652 = vmatprep.subr.mxu0 0.0
      %1653 = vmatpush1.msra.mxu0 0.0
      %1654 = vmatprep.subr.mxu0 0.0
      %1655 = vmatpush1.msra.mxu0 0.0
      %1656 = vmatprep.subr.mxu0 0.0
      %1657 = vmatpush1.msra.mxu0 0.0
      %1658 = vmatprep.subr.mxu0 0.0
      %1659 = vmatpush1.msra.mxu0 0.0
      %1660 = vmatprep.subr.mxu0 0.0
      %1661 = vmatpush1.msra.mxu0 0.0
      %1662 = vmatprep.subr.mxu0 0.0
      %1663 = vmatpush1.msra.mxu0 0.0
      %1664 = vmatprep.subr.mxu0 0.0
      %1665 = vmatpush1.msra.mxu0 0.0
      %1666 = vmatprep.subr.mxu0 0.0
      %1667 = vmatpush1.msra.mxu0 0.0
      %1668 = vmatprep.subr.mxu0 0.0
      %1669 = vmatpush1.msra.mxu0 0.0
      %1670 = vmatprep.subr.mxu0 0.0
      %1671 = vmatpush1.msra.mxu0 0.0
      %1672 = vmatprep.subr.mxu0 0.0
      %1673 = vmatpush1.msra.mxu0 0.0
      %1674 = vmatprep.subr.mxu0 0.0
      %1675 = vmatpush1.msra.mxu0 0.0
      %1676 = vmatprep.subr.mxu0 0.0
      %1677 = vmatpush1.msra.mxu0 0.0
      %1678 = vmatprep.subr.mxu0 0.0
      %1679 = vmatpush1.msra.mxu0 0.0
      %1680 = vmatprep.subr.mxu0 0.0
      %1681 = vmatpush1.msra.mxu0 0.0
      %1682 = vmatprep.subr.mxu0 0.0
      %1683 = vmatpush1.msra.mxu0 0.0
      %1684 = vmatprep.subr.mxu0 0.0
      %1685 = vmatpush1.msra.mxu0 0.0
      %1686 = vmatprep.subr.mxu0 0.0
      %1687 = vmatpush1.msra.mxu0 0.0
      %1688 = vmatprep.subr.mxu0 0.0
      %1689 = vmatpush1.msra.mxu0 0.0
      %1690 = vmatprep.subr.mxu0 0.0
      %1691 = vmatpush1.msra.mxu0 0.0
      %1692 = vmatprep.subr.mxu0 0.0
      %1693 = vmatpush1.msra.mxu0 0.0
      %1694 = vmatprep.subr.mxu0 0.0
      %1695 = vmatpush1.msra.mxu0 0.0
      %1696 = vmatprep.subr.mxu0 0.0
      %1697 = vmatpush1.msra.mxu0 0.0
      %1698 = vmatprep.subr.mxu0 0.0
      %1699 = vmatpush1.msra.mxu0 0.0
      %1700 = vmatprep.subr.mxu0 0.0
      %1701 = vmatpush1.msra.mxu0 0.0
      %1702 = vmatprep.mubr.f32.mxu0 0.0
      %v1703 = vand.u32 %v1632, 4294901760
      %v1704 = vsub.f32 %v1632, %v1703
      %v1705 = vand.u32 %v1704, 4294901760
      %v1706 = vsub.f32 %v1704, %v1705
      %v1707 = vand.u32 %v1706, 4294901760
      %1708 = vmatmul.mubr.f32.gmra.mrb[0].mxu0 %v1707
      %v1709 = vpop.f32.mrb[0].mxu0
      %v1710 = vadd.f32 0.0, %v1709
      %v1711 = vpop.f32.mrb[0].mxu0
      %1712 = vdwg.mxu0
      %1713 = vmatprep.subr.mxu0 0.0
      %v1714 = vand.u32 %v1627, 4294901760
      %v1715 = vsub.f32 %v1627, %v1714
      %v1716 = vand.u32 %v1715, 4294901760
      %v1717 = vsub.f32 %v1715, %v1716
      %v1718 = vand.u32 %v1717, 4294901760
      %1719 = vmatpush1.msra.mxu0 %v1718
      %1720 = vmatprep.subr.mxu0 0.0
      %v1721 = vand.u32 %v1628, 4294901760
      %v1722 = vsub.f32 %v1628, %v1721
      %v1723 = vand.u32 %v1722, 4294901760
      %v1724 = vsub.f32 %v1722, %v1723
      %v1725 = vand.u32 %v1724, 4294901760
      %1726 = vmatpush1.msra.mxu0 %v1725
      %1727 = vmatprep.subr.mxu0 0.0
      %v1728 = vand.u32 %v1629, 4294901760
      %v1729 = vsub.f32 %v1629, %v1728
      %v1730 = vand.u32 %v1729, 4294901760
      %v1731 = vsub.f32 %v1729, %v1730
      %v1732 = vand.u32 %v1731, 4294901760
      %1733 = vmatpush1.msra.mxu0 %v1732
      %1734 = vmatprep.subr.mxu0 0.0
      %v1735 = vand.u32 %v1630, 4294901760
      %v1736 = vsub.f32 %v1630, %v1735
      %v1737 = vand.u32 %v1736, 4294901760
      %v1738 = vsub.f32 %v1736, %v1737
      %v1739 = vand.u32 %v1738, 4294901760
      %1740 = vmatpush1.msra.mxu0 %v1739
      %1741 = vmatprep.subr.mxu0 0.0
      %1742 = vmatpush1.msra.mxu0 0.0
      %1743 = vmatprep.subr.mxu0 0.0
      %1744 = vmatpush1.msra.mxu0 0.0
      %1745 = vmatprep.subr.mxu0 0.0
      %1746 = vmatpush1.msra.mxu0 0.0
      %1747 = vmatprep.subr.mxu0 0.0
      %1748 = vmatpush1.msra.mxu0 0.0
      %1749 = vmatprep.subr.mxu0 0.0
      %1750 = vmatpush1.msra.mxu0 0.0
      %1751 = vmatprep.subr.mxu0 0.0
      %1752 = vmatpush1.msra.mxu0 0.0
      %1753 = vmatprep.subr.mxu0 0.0
      %1754 = vmatpush1.msra.mxu0 0.0
      %1755 = vmatprep.subr.mxu0 0.0
      %1756 = vmatpush1.msra.mxu0 0.0
      %1757 = vmatprep.subr.mxu0 0.0
      %1758 = vmatpush1.msra.mxu0 0.0
      %1759 = vmatprep.subr.mxu0 0.0
      %1760 = vmatpush1.msra.mxu0 0.0
      %1761 = vmatprep.subr.mxu0 0.0
      %1762 = vmatpush1.msra.mxu0 0.0
      %1763 = vmatprep.subr.mxu0 0.0
      %1764 = vmatpush1.msra.mxu0 0.0
      %1765 = vmatprep.subr.mxu0 0.0
      %1766 = vmatpush1.msra.mxu0 0.0
      %1767 = vmatprep.subr.mxu0 0.0
      %1768 = vmatpush1.msra.mxu0 0.0
      %1769 = vmatprep.subr.mxu0 0.0
      %1770 = vmatpush1.msra.mxu0 0.0
      %1771 = vmatprep.subr.mxu0 0.0
      %1772 = vmatpush1.msra.mxu0 0.0
      %1773 = vmatprep.subr.mxu0 0.0
      %1774 = vmatpush1.msra.mxu0 0.0
      %1775 = vmatprep.subr.mxu0 0.0
      %1776 = vmatpush1.msra.mxu0 0.0
      %1777 = vmatprep.subr.mxu0 0.0
      %1778 = vmatpush1.msra.mxu0 0.0
      %1779 = vmatprep.subr.mxu0 0.0
      %1780 = vmatpush1.msra.mxu0 0.0
      %1781 = vmatprep.subr.mxu0 0.0
      %1782 = vmatpush1.msra.mxu0 0.0
      %1783 = vmatprep.subr.mxu0 0.0
      %1784 = vmatpush1.msra.mxu0 0.0
      %1785 = vmatprep.subr.mxu0 0.0
      %1786 = vmatpush1.msra.mxu0 0.0
      %1787 = vmatprep.subr.mxu0 0.0
      %1788 = vmatpush1.msra.mxu0 0.0
      %1789 = vmatprep.subr.mxu0 0.0
      %1790 = vmatpush1.msra.mxu0 0.0
      %1791 = vmatprep.subr.mxu0 0.0
      %1792 = vmatpush1.msra.mxu0 0.0
      %1793 = vmatprep.subr.mxu0 0.0
      %1794 = vmatpush1.msra.mxu0 0.0
      %1795 = vmatprep.subr.mxu0 0.0
      %1796 = vmatpush1.msra.mxu0 0.0
      %1797 = vmatprep.mubr.f32.mxu0 0.0
      %v1798 = vand.u32 %v1632, 4294901760
      %1799 = vmatmul.mubr.f32.gmra.mrb[0].mxu0 %v1798
      %v1800 = vpop.f32.mrb[0].mxu0
      %v1801 = vadd.f32 %v1710, %v1800
      %v1802 = vpop.f32.mrb[0].mxu0
      %1803 = vdwg.mxu0
      %1804 = vmatprep.subr.mxu0 0.0
      %v1805 = vand.u32 %v1627, 4294901760
      %v1806 = vsub.f32 %v1627, %v1805
      %1807 = vmatpush1.msra.mxu0 %v1806
      %1808 = vmatprep.subr.mxu0 0.0
      %v1809 = vand.u32 %v1628, 4294901760
      %v1810 = vsub.f32 %v1628, %v1809
      %1811 = vmatpush1.msra.mxu0 %v1810
      %1812 = vmatprep.subr.mxu0 0.0
      %v1813 = vand.u32 %v1629, 4294901760
      %v1814 = vsub.f32 %v1629, %v1813
      %1815 = vmatpush1.msra.mxu0 %v1814
      %1816 = vmatprep.subr.mxu0 0.0
      %v1817 = vand.u32 %v1630, 4294901760
      %v1818 = vsub.f32 %v1630, %v1817
      %1819 = vmatpush1.msra.mxu0 %v1818
      %1820 = vmatprep.subr.mxu0 0.0
      %1821 = vmatpush1.msra.mxu0 0.0
      %1822 = vmatprep.subr.mxu0 0.0
      %1823 = vmatpush1.msra.mxu0 0.0
      %1824 = vmatprep.subr.mxu0 0.0
      %1825 = vmatpush1.msra.mxu0 0.0
      %1826 = vmatprep.subr.mxu0 0.0
      %1827 = vmatpush1.msra.mxu0 0.0
      %1828 = vmatprep.subr.mxu0 0.0
      %1829 = vmatpush1.msra.mxu0 0.0
      %1830 = vmatprep.subr.mxu0 0.0
      %1831 = vmatpush1.msra.mxu0 0.0
      %1832 = vmatprep.subr.mxu0 0.0
      %1833 = vmatpush1.msra.mxu0 0.0
      %1834 = vmatprep.subr.mxu0 0.0
      %1835 = vmatpush1.msra.mxu0 0.0
      %1836 = vmatprep.subr.mxu0 0.0
      %1837 = vmatpush1.msra.mxu0 0.0
      %1838 = vmatprep.subr.mxu0 0.0
      %1839 = vmatpush1.msra.mxu0 0.0
      %1840 = vmatprep.subr.mxu0 0.0
      %1841 = vmatpush1.msra.mxu0 0.0
      %1842 = vmatprep.subr.mxu0 0.0
      %1843 = vmatpush1.msra.mxu0 0.0
      %1844 = vmatprep.subr.mxu0 0.0
      %1845 = vmatpush1.msra.mxu0 0.0
      %1846 = vmatprep.subr.mxu0 0.0
      %1847 = vmatpush1.msra.mxu0 0.0
      %1848 = vmatprep.subr.mxu0 0.0
      %1849 = vmatpush1.msra.mxu0 0.0
      %1850 = vmatprep.subr.mxu0 0.0
      %1851 = vmatpush1.msra.mxu0 0.0
      %1852 = vmatprep.subr.mxu0 0.0
      %1853 = vmatpush1.msra.mxu0 0.0
      %1854 = vmatprep.subr.mxu0 0.0
      %1855 = vmatpush1.msra.mxu0 0.0
      %1856 = vmatprep.subr.mxu0 0.0
      %1857 = vmatpush1.msra.mxu0 0.0
      %1858 = vmatprep.subr.mxu0 0.0
      %1859 = vmatpush1.msra.mxu0 0.0
      %1860 = vmatprep.subr.mxu0 0.0
      %1861 = vmatpush1.msra.mxu0 0.0
      %1862 = vmatprep.subr.mxu0 0.0
      %1863 = vmatpush1.msra.mxu0 0.0
      %1864 = vmatprep.subr.mxu0 0.0
      %1865 = vmatpush1.msra.mxu0 0.0
      %1866 = vmatprep.subr.mxu0 0.0
      %1867 = vmatpush1.msra.mxu0 0.0
      %1868 = vmatprep.subr.mxu0 0.0
      %1869 = vmatpush1.msra.mxu0 0.0
      %1870 = vmatprep.subr.mxu0 0.0
      %1871 = vmatpush1.msra.mxu0 0.0
      %1872 = vmatprep.subr.mxu0 0.0
      %1873 = vmatpush1.msra.mxu0 0.0
      %1874 = vmatprep.subr.mxu0 0.0
      %1875 = vmatpush1.msra.mxu0 0.0
      %1876 = vmatprep.mubr.f32.mxu0 0.0
      %v1877 = vand.u32 %v1632, 4294901760
      %v1878 = vsub.f32 %v1632, %v1877
      %1879 = vmatmul.mubr.f32.gmra.mrb[0].mxu0 %v1878
      %v1880 = vpop.f32.mrb[0].mxu0
      %v1881 = vadd.f32 %v1801, %v1880
      %v1882 = vpop.f32.mrb[0].mxu0
      %1883 = vdwg.mxu0
      %1884 = vmatprep.subr.mxu0 0.0
      %v1885 = vand.u32 %v1627, 4294901760
      %1886 = vmatpush1.msra.mxu0 %v1885
      %1887 = vmatprep.subr.mxu0 0.0
      %v1888 = vand.u32 %v1628, 4294901760
      %1889 = vmatpush1.msra.mxu0 %v1888
      %1890 = vmatprep.subr.mxu0 0.0
      %v1891 = vand.u32 %v1629, 4294901760
      %1892 = vmatpush1.msra.mxu0 %v1891
      %1893 = vmatprep.subr.mxu0 0.0
      %v1894 = vand.u32 %v1630, 4294901760
      %1895 = vmatpush1.msra.mxu0 %v1894
      %1896 = vmatprep.subr.mxu0 0.0
      %1897 = vmatpush1.msra.mxu0 0.0
      %1898 = vmatprep.subr.mxu0 0.0
      %1899 = vmatpush1.msra.mxu0 0.0
      %1900 = vmatprep.subr.mxu0 0.0
      %1901 = vmatpush1.msra.mxu0 0.0
      %1902 = vmatprep.subr.mxu0 0.0
      %1903 = vmatpush1.msra.mxu0 0.0
      %1904 = vmatprep.subr.mxu0 0.0
      %1905 = vmatpush1.msra.mxu0 0.0
      %1906 = vmatprep.subr.mxu0 0.0
      %1907 = vmatpush1.msra.mxu0 0.0
      %1908 = vmatprep.subr.mxu0 0.0
      %1909 = vmatpush1.msra.mxu0 0.0
      %1910 = vmatprep.subr.mxu0 0.0
      %1911 = vmatpush1.msra.mxu0 0.0
      %1912 = vmatprep.subr.mxu0 0.0
      %1913 = vmatpush1.msra.mxu0 0.0
      %1914 = vmatprep.subr.mxu0 0.0
      %1915 = vmatpush1.msra.mxu0 0.0
      %1916 = vmatprep.subr.mxu0 0.0
      %1917 = vmatpush1.msra.mxu0 0.0
      %1918 = vmatprep.subr.mxu0 0.0
      %1919 = vmatpush1.msra.mxu0 0.0
      %1920 = vmatprep.subr.mxu0 0.0
      %1921 = vmatpush1.msra.mxu0 0.0
      %1922 = vmatprep.subr.mxu0 0.0
      %1923 = vmatpush1.msra.mxu0 0.0
      %1924 = vmatprep.subr.mxu0 0.0
      %1925 = vmatpush1.msra.mxu0 0.0
      %1926 = vmatprep.subr.mxu0 0.0
      %1927 = vmatpush1.msra.mxu0 0.0
      %1928 = vmatprep.subr.mxu0 0.0
      %1929 = vmatpush1.msra.mxu0 0.0
      %1930 = vmatprep.subr.mxu0 0.0
      %1931 = vmatpush1.msra.mxu0 0.0
      %1932 = vmatprep.subr.mxu0 0.0
      %1933 = vmatpush1.msra.mxu0 0.0
      %1934 = vmatprep.subr.mxu0 0.0
      %1935 = vmatpush1.msra.mxu0 0.0
      %1936 = vmatprep.subr.mxu0 0.0
      %1937 = vmatpush1.msra.mxu0 0.0
      %1938 = vmatprep.subr.mxu0 0.0
      %1939 = vmatpush1.msra.mxu0 0.0
      %1940 = vmatprep.subr.mxu0 0.0
      %1941 = vmatpush1.msra.mxu0 0.0
      %1942 = vmatprep.subr.mxu0 0.0
      %1943 = vmatpush1.msra.mxu0 0.0
      %1944 = vmatprep.subr.mxu0 0.0
      %1945 = vmatpush1.msra.mxu0 0.0
      %1946 = vmatprep.subr.mxu0 0.0
      %1947 = vmatpush1.msra.mxu0 0.0
      %1948 = vmatprep.subr.mxu0 0.0
      %1949 = vmatpush1.msra.mxu0 0.0
      %1950 = vmatprep.subr.mxu0 0.0
      %1951 = vmatpush1.msra.mxu0 0.0
      %1952 = vmatprep.mubr.f32.mxu0 0.0
      %v1953 = vand.u32 %v1632, 4294901760
      %v1954 = vsub.f32 %v1632, %v1953
      %v1955 = vand.u32 %v1954, 4294901760
      %1956 = vmatmul.mubr.f32.gmra.mrb[0].mxu0 %v1955
      %v1957 = vpop.f32.mrb[0].mxu0
      %v1958 = vadd.f32 %v1881, %v1957
      %v1959 = vpop.f32.mrb[0].mxu0
      %1960 = vdwg.mxu0
      %1961 = vmatprep.subr.mxu0 0.0
      %v1962 = vand.u32 %v1627, 4294901760
      %v1963 = vsub.f32 %v1627, %v1962
      %v1964 = vand.u32 %v1963, 4294901760
      %1965 = vmatpush1.msra.mxu0 %v1964
      %1966 = vmatprep.subr.mxu0 0.0
      %v1967 = vand.u32 %v1628, 4294901760
      %v1968 = vsub.f32 %v1628, %v1967
      %v1969 = vand.u32 %v1968, 4294901760
      %1970 = vmatpush1.msra.mxu0 %v1969
      %1971 = vmatprep.subr.mxu0 0.0
      %v1972 = vand.u32 %v1629, 4294901760
      %v1973 = vsub.f32 %v1629, %v1972
      %v1974 = vand.u32 %v1973, 4294901760
      %1975 = vmatpush1.msra.mxu0 %v1974
      %1976 = vmatprep.subr.mxu0 0.0
      %v1977 = vand.u32 %v1630, 4294901760
      %v1978 = vsub.f32 %v1630, %v1977
      %v1979 = vand.u32 %v1978, 4294901760
      %1980 = vmatpush1.msra.mxu0 %v1979
      %1981 = vmatprep.subr.mxu0 0.0
      %1982 = vmatpush1.msra.mxu0 0.0
      %1983 = vmatprep.subr.mxu0 0.0
      %1984 = vmatpush1.msra.mxu0 0.0
      %1985 = vmatprep.subr.mxu0 0.0
      %1986 = vmatpush1.msra.mxu0 0.0
      %1987 = vmatprep.subr.mxu0 0.0
      %1988 = vmatpush1.msra.mxu0 0.0
      %1989 = vmatprep.subr.mxu0 0.0
      %1990 = vmatpush1.msra.mxu0 0.0
      %1991 = vmatprep.subr.mxu0 0.0
      %1992 = vmatpush1.msra.mxu0 0.0
      %1993 = vmatprep.subr.mxu0 0.0
      %1994 = vmatpush1.msra.mxu0 0.0
      %1995 = vmatprep.subr.mxu0 0.0
      %1996 = vmatpush1.msra.mxu0 0.0
      %1997 = vmatprep.subr.mxu0 0.0
      %1998 = vmatpush1.msra.mxu0 0.0
      %1999 = vmatprep.subr.mxu0 0.0
      %2000 = vmatpush1.msra.mxu0 0.0
      %2001 = vmatprep.subr.mxu0 0.0
      %2002 = vmatpush1.msra.mxu0 0.0
      %2003 = vmatprep.subr.mxu0 0.0
      %2004 = vmatpush1.msra.mxu0 0.0
      %2005 = vmatprep.subr.mxu0 0.0
      %2006 = vmatpush1.msra.mxu0 0.0
      %2007 = vmatprep.subr.mxu0 0.0
      %2008 = vmatpush1.msra.mxu0 0.0
      %2009 = vmatprep.subr.mxu0 0.0
      %2010 = vmatpush1.msra.mxu0 0.0
      %2011 = vmatprep.subr.mxu0 0.0
      %2012 = vmatpush1.msra.mxu0 0.0
      %2013 = vmatprep.subr.mxu0 0.0
      %2014 = vmatpush1.msra.mxu0 0.0
      %2015 = vmatprep.subr.mxu0 0.0
      %2016 = vmatpush1.msra.mxu0 0.0
      %2017 = vmatprep.subr.mxu0 0.0
      %2018 = vmatpush1.msra.mxu0 0.0
      %2019 = vmatprep.subr.mxu0 0.0
      %2020 = vmatpush1.msra.mxu0 0.0
      %2021 = vmatprep.subr.mxu0 0.0
      %2022 = vmatpush1.msra.mxu0 0.0
      %2023 = vmatprep.subr.mxu0 0.0
      %2024 = vmatpush1.msra.mxu0 0.0
      %2025 = vmatprep.subr.mxu0 0.0
      %2026 = vmatpush1.msra.mxu0 0.0
      %2027 = vmatprep.subr.mxu0 0.0
      %2028 = vmatpush1.msra.mxu0 0.0
      %2029 = vmatprep.subr.mxu0 0.0
      %2030 = vmatpush1.msra.mxu0 0.0
      %2031 = vmatprep.subr.mxu0 0.0
      %2032 = vmatpush1.msra.mxu0 0.0
      %2033 = vmatprep.subr.mxu0 0.0
      %2034 = vmatpush1.msra.mxu0 0.0
      %2035 = vmatprep.subr.mxu0 0.0
      %2036 = vmatpush1.msra.mxu0 0.0
      %2037 = vmatprep.mubr.f32.mxu0 0.0
      %v2038 = vand.u32 %v1632, 4294901760
      %2039 = vmatmul.mubr.f32.gmra.mrb[0].mxu0 %v2038
      %v2040 = vpop.f32.mrb[0].mxu0
      %v2041 = vadd.f32 %v1958, %v2040
      %v2042 = vpop.f32.mrb[0].mxu0
      %2043 = vdwg.mxu0
      %2044 = vmatprep.subr.mxu0 0.0
      %v2045 = vand.u32 %v1627, 4294901760
      %2046 = vmatpush1.msra.mxu0 %v2045
      %2047 = vmatprep.subr.mxu0 0.0
      %v2048 = vand.u32 %v1628, 4294901760
      %2049 = vmatpush1.msra.mxu0 %v2048
      %2050 = vmatprep.subr.mxu0 0.0
      %v2051 = vand.u32 %v1629, 4294901760
      %2052 = vmatpush1.msra.mxu0 %v2051
      %2053 = vmatprep.subr.mxu0 0.0
      %v2054 = vand.u32 %v1630, 4294901760
      %2055 = vmatpush1.msra.mxu0 %v2054
      %2056 = vmatprep.subr.mxu0 0.0
      %2057 = vmatpush1.msra.mxu0 0.0
      %2058 = vmatprep.subr.mxu0 0.0
      %2059 = vmatpush1.msra.mxu0 0.0
      %2060 = vmatprep.subr.mxu0 0.0
      %2061 = vmatpush1.msra.mxu0 0.0
      %2062 = vmatprep.subr.mxu0 0.0
      %2063 = vmatpush1.msra.mxu0 0.0
      %2064 = vmatprep.subr.mxu0 0.0
      %2065 = vmatpush1.msra.mxu0 0.0
      %2066 = vmatprep.subr.mxu0 0.0
      %2067 = vmatpush1.msra.mxu0 0.0
      %2068 = vmatprep.subr.mxu0 0.0
      %2069 = vmatpush1.msra.mxu0 0.0
      %2070 = vmatprep.subr.mxu0 0.0
      %2071 = vmatpush1.msra.mxu0 0.0
      %2072 = vmatprep.subr.mxu0 0.0
      %2073 = vmatpush1.msra.mxu0 0.0
      %2074 = vmatprep.subr.mxu0 0.0
      %2075 = vmatpush1.msra.mxu0 0.0
      %2076 = vmatprep.subr.mxu0 0.0
      %2077 = vmatpush1.msra.mxu0 0.0
      %2078 = vmatprep.subr.mxu0 0.0
      %2079 = vmatpush1.msra.mxu0 0.0
      %2080 = vmatprep.subr.mxu0 0.0
      %2081 = vmatpush1.msra.mxu0 0.0
      %2082 = vmatprep.subr.mxu0 0.0
      %2083 = vmatpush1.msra.mxu0 0.0
      %2084 = vmatprep.subr.mxu0 0.0
      %2085 = vmatpush1.msra.mxu0 0.0
      %2086 = vmatprep.subr.mxu0 0.0
      %2087 = vmatpush1.msra.mxu0 0.0
      %2088 = vmatprep.subr.mxu0 0.0
      %2089 = vmatpush1.msra.mxu0 0.0
      %2090 = vmatprep.subr.mxu0 0.0
      %2091 = vmatpush1.msra.mxu0 0.0
      %2092 = vmatprep.subr.mxu0 0.0
      %2093 = vmatpush1.msra.mxu0 0.0
      %2094 = vmatprep.subr.mxu0 0.0
      %2095 = vmatpush1.msra.mxu0 0.0
      %2096 = vmatprep.subr.mxu0 0.0
      %2097 = vmatpush1.msra.mxu0 0.0
      %2098 = vmatprep.subr.mxu0 0.0
      %2099 = vmatpush1.msra.mxu0 0.0
      %2100 = vmatprep.subr.mxu0 0.0
      %2101 = vmatpush1.msra.mxu0 0.0
      %2102 = vmatprep.subr.mxu0 0.0
      %2103 = vmatpush1.msra.mxu0 0.0
      %2104 = vmatprep.subr.mxu0 0.0
      %2105 = vmatpush1.msra.mxu0 0.0
      %2106 = vmatprep.subr.mxu0 0.0
      %2107 = vmatpush1.msra.mxu0 0.0
      %2108 = vmatprep.subr.mxu0 0.0
      %2109 = vmatpush1.msra.mxu0 0.0
      %2110 = vmatprep.subr.mxu0 0.0
      %2111 = vmatpush1.msra.mxu0 0.0
      %2112 = vmatprep.mubr.f32.mxu0 0.0
      %v2113 = vand.u32 %v1632, 4294901760
      %2114 = vmatmul.mubr.f32.gmra.mrb[0].mxu0 %v2113
      %v2115 = vpop.f32.mrb[0].mxu0
      %v2116 = vadd.f32 %v2041, %v2115
      %v2117 = vpop.f32.mrb[0].mxu0
      %2118 = vdwg.mxu0
      %v2119 = vadd.f32 %v1626, %v2116
      %v2120 = vld [vmem:[%s9] sm:$0x1]
      %v2122 = vlaneseq
      %v2123 = vshrl.u32 %v2122, 7
      %v2124 = vsub.s32 0, %v2123
      %v2125 = vrot.slane %v2120, %v2124
      %v2127 = vadd.f32 %v2119, %v2125
      %v2128 = vxor.u32 %v2127, 2147483648
      %v2129 = vmul.f32 %v2128, 1.442695
      %v2130 = vpow.pop %v2129
      %v2131 = vadd.f32 %v2130, 1.0
      %v2132 = vrcp.pop %v2131
      %v2133 = vmul.f32 1.0, %v2132
      %v2134 = vtanh.pop %v2127
      %2136 = vrot.lane.b32.xlu0 %v2134, 96
      %v2137 = vpop.permute.xlu0 %2136
      %v2139 = vmul.f32 %v2133, %v2137
      %v2140 = vtanh.pop %v2139
      %2142 = vrot.lane.b32.xlu0 %v2140, 64
      %v2143 = vpop.permute.xlu0 %2142
      %v2145 = vmul.f32 %v2133, %v2143
      %v2146 = vld [vmem:[%s10] sm:$0xff]
      %v2147 = vld [vmem:[%s10 + $0x8] sm:$0xff]
      %v2148 = vld [vmem:[%s10 + $0x10] sm:$0xff]
      %v2149 = vld [vmem:[%s10 + $0x18] sm:$0xff]
      %v2150 = vld [vmem:[%s11] sm:$0x1]
      %v2152 = vlaneseq
      %v2153 = vshrl.u32 %v2152, 7
      %v2154 = vsub.s32 0, %v2153
      %v2155 = vrot.slane %v2150, %v2154
      %2158 = vrot.lane.b32.xlu0 %v2145, 64
      %v2159 = vpop.permute.xlu0 %2158
      %v2160 = vsel %vm447, %v2159, 0
      %2162 = vmatprep.subr.mxu0 0.0
      %v2163 = vand.u32 %v2146, 4294901760
      %2164 = vmatpush1.msra.mxu0 %v2163
      %2165 = vmatprep.subr.mxu0 0.0
      %v2166 = vand.u32 %v2147, 4294901760
      %2167 = vmatpush1.msra.mxu0 %v2166
      %2168 = vmatprep.subr.mxu0 0.0
      %v2169 = vand.u32 %v2148, 4294901760
      %2170 = vmatpush1.msra.mxu0 %v2169
      %2171 = vmatprep.subr.mxu0 0.0
      %v2172 = vand.u32 %v2149, 4294901760
      %2173 = vmatpush1.msra.mxu0 %v2172
      %2174 = vmatprep.subr.mxu0 0.0
      %2175 = vmatpush1.msra.mxu0 0.0
      %2176 = vmatprep.subr.mxu0 0.0
      %2177 = vmatpush1.msra.mxu0 0.0
      %2178 = vmatprep.subr.mxu0 0.0
      %2179 = vmatpush1.msra.mxu0 0.0
      %2180 = vmatprep.subr.mxu0 0.0
      %2181 = vmatpush1.msra.mxu0 0.0
      %2182 = vmatprep.subr.mxu0 0.0
      %2183 = vmatpush1.msra.mxu0 0.0
      %2184 = vmatprep.subr.mxu0 0.0
      %2185 = vmatpush1.msra.mxu0 0.0
      %2186 = vmatprep.subr.mxu0 0.0
      %2187 = vmatpush1.msra.mxu0 0.0
      %2188 = vmatprep.subr.mxu0 0.0
      %2189 = vmatpush1.msra.mxu0 0.0
      %2190 = vmatprep.subr.mxu0 0.0
      %2191 = vmatpush1.msra.mxu0 0.0
      %2192 = vmatprep.subr.mxu0 0.0
      %2193 = vmatpush1.msra.mxu0 0.0
      %2194 = vmatprep.subr.mxu0 0.0
      %2195 = vmatpush1.msra.mxu0 0.0
      %2196 = vmatprep.subr.mxu0 0.0
      %2197 = vmatpush1.msra.mxu0 0.0
      %2198 = vmatprep.subr.mxu0 0.0
      %2199 = vmatpush1.msra.mxu0 0.0
      %2200 = vmatprep.subr.mxu0 0.0
      %2201 = vmatpush1.msra.mxu0 0.0
      %2202 = vmatprep.subr.mxu0 0.0
      %2203 = vmatpush1.msra.mxu0 0.0
      %2204 = vmatprep.subr.mxu0 0.0
      %2205 = vmatpush1.msra.mxu0 0.0
      %2206 = vmatprep.subr.mxu0 0.0
      %2207 = vmatpush1.msra.mxu0 0.0
      %2208 = vmatprep.subr.mxu0 0.0
      %2209 = vmatpush1.msra.mxu0 0.0
      %2210 = vmatprep.subr.mxu0 0.0
      %2211 = vmatpush1.msra.mxu0 0.0
      %2212 = vmatprep.subr.mxu0 0.0
      %2213 = vmatpush1.msra.mxu0 0.0
      %2214 = vmatprep.subr.mxu0 0.0
      %2215 = vmatpush1.msra.mxu0 0.0
      %2216 = vmatprep.subr.mxu0 0.0
      %2217 = vmatpush1.msra.mxu0 0.0
      %2218 = vmatprep.subr.mxu0 0.0
      %2219 = vmatpush1.msra.mxu0 0.0
      %2220 = vmatprep.subr.mxu0 0.0
      %2221 = vmatpush1.msra.mxu0 0.0
      %2222 = vmatprep.subr.mxu0 0.0
      %2223 = vmatpush1.msra.mxu0 0.0
      %2224 = vmatprep.subr.mxu0 0.0
      %2225 = vmatpush1.msra.mxu0 0.0
      %2226 = vmatprep.subr.mxu0 0.0
      %2227 = vmatpush1.msra.mxu0 0.0
      %2228 = vmatprep.subr.mxu0 0.0
      %2229 = vmatpush1.msra.mxu0 0.0
      %2230 = vmatprep.mubr.f32.mxu0 0.0
      %v2231 = vand.u32 %v2160, 4294901760
      %v2232 = vsub.f32 %v2160, %v2231
      %v2233 = vand.u32 %v2232, 4294901760
      %v2234 = vsub.f32 %v2232, %v2233
      %v2235 = vand.u32 %v2234, 4294901760
      %2236 = vmatmul.mubr.f32.gmra.mrb[0].mxu0 %v2235
      %v2237 = vpop.f32.mrb[0].mxu0
      %v2238 = vadd.f32 %v2155, %v2237
      %v2239 = vpop.f32.mrb[0].mxu0
      %2240 = vdwg.mxu0
      %2241 = vmatprep.subr.mxu0 0.0
      %v2242 = vand.u32 %v2146, 4294901760
      %v2243 = vsub.f32 %v2146, %v2242
      %v2244 = vand.u32 %v2243, 4294901760
      %v2245 = vsub.f32 %v2243, %v2244
      %v2246 = vand.u32 %v2245, 4294901760
      %2247 = vmatpush1.msra.mxu0 %v2246
      %2248 = vmatprep.subr.mxu0 0.0
      %v2249 = vand.u32 %v2147, 4294901760
      %v2250 = vsub.f32 %v2147, %v2249
      %v2251 = vand.u32 %v2250, 4294901760
      %v2252 = vsub.f32 %v2250, %v2251
      %v2253 = vand.u32 %v2252, 4294901760
      %2254 = vmatpush1.msra.mxu0 %v2253
      %2255 = vmatprep.subr.mxu0 0.0
      %v2256 = vand.u32 %v2148, 4294901760
      %v2257 = vsub.f32 %v2148, %v2256
      %v2258 = vand.u32 %v2257, 4294901760
      %v2259 = vsub.f32 %v2257, %v2258
      %v2260 = vand.u32 %v2259, 4294901760
      %2261 = vmatpush1.msra.mxu0 %v2260
      %2262 = vmatprep.subr.mxu0 0.0
      %v2263 = vand.u32 %v2149, 4294901760
      %v2264 = vsub.f32 %v2149, %v2263
      %v2265 = vand.u32 %v2264, 4294901760
      %v2266 = vsub.f32 %v2264, %v2265
      %v2267 = vand.u32 %v2266, 4294901760
      %2268 = vmatpush1.msra.mxu0 %v2267
      %2269 = vmatprep.subr.mxu0 0.0
      %2270 = vmatpush1.msra.mxu0 0.0
      %2271 = vmatprep.subr.mxu0 0.0
      %2272 = vmatpush1.msra.mxu0 0.0
      %2273 = vmatprep.subr.mxu0 0.0
      %2274 = vmatpush1.msra.mxu0 0.0
      %2275 = vmatprep.subr.mxu0 0.0
      %2276 = vmatpush1.msra.mxu0 0.0
      %2277 = vmatprep.subr.mxu0 0.0
      %2278 = vmatpush1.msra.mxu0 0.0
      %2279 = vmatprep.subr.mxu0 0.0
      %2280 = vmatpush1.msra.mxu0 0.0
      %2281 = vmatprep.subr.mxu0 0.0
      %2282 = vmatpush1.msra.mxu0 0.0
      %2283 = vmatprep.subr.mxu0 0.0
      %2284 = vmatpush1.msra.mxu0 0.0
      %2285 = vmatprep.subr.mxu0 0.0
      %2286 = vmatpush1.msra.mxu0 0.0
      %2287 = vmatprep.subr.mxu0 0.0
      %2288 = vmatpush1.msra.mxu0 0.0
      %2289 = vmatprep.subr.mxu0 0.0
      %2290 = vmatpush1.msra.mxu0 0.0
      %2291 = vmatprep.subr.mxu0 0.0
      %2292 = vmatpush1.msra.mxu0 0.0
      %2293 = vmatprep.subr.mxu0 0.0
      %2294 = vmatpush1.msra.mxu0 0.0
      %2295 = vmatprep.subr.mxu0 0.0
      %2296 = vmatpush1.msra.mxu0 0.0
      %2297 = vmatprep.subr.mxu0 0.0
      %2298 = vmatpush1.msra.mxu0 0.0
      %2299 = vmatprep.subr.mxu0 0.0
      %2300 = vmatpush1.msra.mxu0 0.0
      %2301 = vmatprep.subr.mxu0 0.0
      %2302 = vmatpush1.msra.mxu0 0.0
      %2303 = vmatprep.subr.mxu0 0.0
      %2304 = vmatpush1.msra.mxu0 0.0
      %2305 = vmatprep.subr.mxu0 0.0
      %2306 = vmatpush1.msra.mxu0 0.0
      %2307 = vmatprep.subr.mxu0 0.0
      %2308 = vmatpush1.msra.mxu0 0.0
      %2309 = vmatprep.subr.mxu0 0.0
      %2310 = vmatpush1.msra.mxu0 0.0
      %2311 = vmatprep.subr.mxu0 0.0
      %2312 = vmatpush1.msra.mxu0 0.0
      %2313 = vmatprep.subr.mxu0 0.0
      %2314 = vmatpush1.msra.mxu0 0.0
      %2315 = vmatprep.subr.mxu0 0.0
      %2316 = vmatpush1.msra.mxu0 0.0
      %2317 = vmatprep.subr.mxu0 0.0
      %2318 = vmatpush1.msra.mxu0 0.0
      %2319 = vmatprep.subr.mxu0 0.0
      %2320 = vmatpush1.msra.mxu0 0.0
      %2321 = vmatprep.subr.mxu0 0.0
      %2322 = vmatpush1.msra.mxu0 0.0
      %2323 = vmatprep.subr.mxu0 0.0
      %2324 = vmatpush1.msra.mxu0 0.0
      %2325 = vmatprep.mubr.f32.mxu0 0.0
      %v2326 = vand.u32 %v2160, 4294901760
      %2327 = vmatmul.mubr.f32.gmra.mrb[0].mxu0 %v2326
      %v2328 = vpop.f32.mrb[0].mxu0
      %v2329 = vadd.f32 %v2238, %v2328
      %v2330 = vpop.f32.mrb[0].mxu0
      %2331 = vdwg.mxu0
      %2332 = vmatprep.subr.mxu0 0.0
      %v2333 = vand.u32 %v2146, 4294901760
      %v2334 = vsub.f32 %v2146, %v2333
      %2335 = vmatpush1.msra.mxu0 %v2334
      %2336 = vmatprep.subr.mxu0 0.0
      %v2337 = vand.u32 %v2147, 4294901760
      %v2338 = vsub.f32 %v2147, %v2337
      %2339 = vmatpush1.msra.mxu0 %v2338
      %2340 = vmatprep.subr.mxu0 0.0
      %v2341 = vand.u32 %v2148, 4294901760
      %v2342 = vsub.f32 %v2148, %v2341
      %2343 = vmatpush1.msra.mxu0 %v2342
      %2344 = vmatprep.subr.mxu0 0.0
      %v2345 = vand.u32 %v2149, 4294901760
      %v2346 = vsub.f32 %v2149, %v2345
      %2347 = vmatpush1.msra.mxu0 %v2346
      %2348 = vmatprep.subr.mxu0 0.0
      %2349 = vmatpush1.msra.mxu0 0.0
      %2350 = vmatprep.subr.mxu0 0.0
      %2351 = vmatpush1.msra.mxu0 0.0
      %2352 = vmatprep.subr.mxu0 0.0
      %2353 = vmatpush1.msra.mxu0 0.0
      %2354 = vmatprep.subr.mxu0 0.0
      %2355 = vmatpush1.msra.mxu0 0.0
      %2356 = vmatprep.subr.mxu0 0.0
      %2357 = vmatpush1.msra.mxu0 0.0
      %2358 = vmatprep.subr.mxu0 0.0
      %2359 = vmatpush1.msra.mxu0 0.0
      %2360 = vmatprep.subr.mxu0 0.0
      %2361 = vmatpush1.msra.mxu0 0.0
      %2362 = vmatprep.subr.mxu0 0.0
      %2363 = vmatpush1.msra.mxu0 0.0
      %2364 = vmatprep.subr.mxu0 0.0
      %2365 = vmatpush1.msra.mxu0 0.0
      %2366 = vmatprep.subr.mxu0 0.0
      %2367 = vmatpush1.msra.mxu0 0.0
      %2368 = vmatprep.subr.mxu0 0.0
      %2369 = vmatpush1.msra.mxu0 0.0
      %2370 = vmatprep.subr.mxu0 0.0
      %2371 = vmatpush1.msra.mxu0 0.0
      %2372 = vmatprep.subr.mxu0 0.0
      %2373 = vmatpush1.msra.mxu0 0.0
      %2374 = vmatprep.subr.mxu0 0.0
      %2375 = vmatpush1.msra.mxu0 0.0
      %2376 = vmatprep.subr.mxu0 0.0
      %2377 = vmatpush1.msra.mxu0 0.0
      %2378 = vmatprep.subr.mxu0 0.0
      %2379 = vmatpush1.msra.mxu0 0.0
      %2380 = vmatprep.subr.mxu0 0.0
      %2381 = vmatpush1.msra.mxu0 0.0
      %2382 = vmatprep.subr.mxu0 0.0
      %2383 = vmatpush1.msra.mxu0 0.0
      %2384 = vmatprep.subr.mxu0 0.0
      %2385 = vmatpush1.msra.mxu0 0.0
      %2386 = vmatprep.subr.mxu0 0.0
      %2387 = vmatpush1.msra.mxu0 0.0
      %2388 = vmatprep.subr.mxu0 0.0
      %2389 = vmatpush1.msra.mxu0 0.0
      %2390 = vmatprep.subr.mxu0 0.0
      %2391 = vmatpush1.msra.mxu0 0.0
      %2392 = vmatprep.subr.mxu0 0.0
      %2393 = vmatpush1.msra.mxu0 0.0
      %2394 = vmatprep.subr.mxu0 0.0
      %2395 = vmatpush1.msra.mxu0 0.0
      %2396 = vmatprep.subr.mxu0 0.0
      %2397 = vmatpush1.msra.mxu0 0.0
      %2398 = vmatprep.subr.mxu0 0.0
      %2399 = vmatpush1.msra.mxu0 0.0
      %2400 = vmatprep.subr.mxu0 0.0
      %2401 = vmatpush1.msra.mxu0 0.0
      %2402 = vmatprep.subr.mxu0 0.0
      %2403 = vmatpush1.msra.mxu0 0.0
      %2404 = vmatprep.mubr.f32.mxu0 0.0
      %v2405 = vand.u32 %v2160, 4294901760
      %v2406 = vsub.f32 %v2160, %v2405
      %2407 = vmatmul.mubr.f32.gmra.mrb[0].mxu0 %v2406
      %v2408 = vpop.f32.mrb[0].mxu0
      %v2409 = vadd.f32 %v2329, %v2408
      %v2410 = vpop.f32.mrb[0].mxu0
      %2411 = vdwg.mxu0
      %2412 = vmatprep.subr.mxu0 0.0
      %v2413 = vand.u32 %v2146, 4294901760
      %2414 = vmatpush1.msra.mxu0 %v2413
      %2415 = vmatprep.subr.mxu0 0.0
      %v2416 = vand.u32 %v2147, 4294901760
      %2417 = vmatpush1.msra.mxu0 %v2416
      %2418 = vmatprep.subr.mxu0 0.0
      %v2419 = vand.u32 %v2148, 4294901760
      %2420 = vmatpush1.msra.mxu0 %v2419
      %2421 = vmatprep.subr.mxu0 0.0
      %v2422 = vand.u32 %v2149, 4294901760
      %2423 = vmatpush1.msra.mxu0 %v2422
      %2424 = vmatprep.subr.mxu0 0.0
      %2425 = vmatpush1.msra.mxu0 0.0
      %2426 = vmatprep.subr.mxu0 0.0
      %2427 = vmatpush1.msra.mxu0 0.0
      %2428 = vmatprep.subr.mxu0 0.0
      %2429 = vmatpush1.msra.mxu0 0.0
      %2430 = vmatprep.subr.mxu0 0.0
      %2431 = vmatpush1.msra.mxu0 0.0
      %2432 = vmatprep.subr.mxu0 0.0
      %2433 = vmatpush1.msra.mxu0 0.0
      %2434 = vmatprep.subr.mxu0 0.0
      %2435 = vmatpush1.msra.mxu0 0.0
      %2436 = vmatprep.subr.mxu0 0.0
      %2437 = vmatpush1.msra.mxu0 0.0
      %2438 = vmatprep.subr.mxu0 0.0
      %2439 = vmatpush1.msra.mxu0 0.0
      %2440 = vmatprep.subr.mxu0 0.0
      %2441 = vmatpush1.msra.mxu0 0.0
      %2442 = vmatprep.subr.mxu0 0.0
      %2443 = vmatpush1.msra.mxu0 0.0
      %2444 = vmatprep.subr.mxu0 0.0
      %2445 = vmatpush1.msra.mxu0 0.0
      %2446 = vmatprep.subr.mxu0 0.0
      %2447 = vmatpush1.msra.mxu0 0.0
      %2448 = vmatprep.subr.mxu0 0.0
      %2449 = vmatpush1.msra.mxu0 0.0
      %2450 = vmatprep.subr.mxu0 0.0
      %2451 = vmatpush1.msra.mxu0 0.0
      %2452 = vmatprep.subr.mxu0 0.0
      %2453 = vmatpush1.msra.mxu0 0.0
      %2454 = vmatprep.subr.mxu0 0.0
      %2455 = vmatpush1.msra.mxu0 0.0
      %2456 = vmatprep.subr.mxu0 0.0
      %2457 = vmatpush1.msra.mxu0 0.0
      %2458 = vmatprep.subr.mxu0 0.0
      %2459 = vmatpush1.msra.mxu0 0.0
      %2460 = vmatprep.subr.mxu0 0.0
      %2461 = vmatpush1.msra.mxu0 0.0
      %2462 = vmatprep.subr.mxu0 0.0
      %2463 = vmatpush1.msra.mxu0 0.0
      %2464 = vmatprep.subr.mxu0 0.0
      %2465 = vmatpush1.msra.mxu0 0.0
      %2466 = vmatprep.subr.mxu0 0.0
      %2467 = vmatpush1.msra.mxu0 0.0
      %2468 = vmatprep.subr.mxu0 0.0
      %2469 = vmatpush1.msra.mxu0 0.0
      %2470 = vmatprep.subr.mxu0 0.0
      %2471 = vmatpush1.msra.mxu0 0.0
      %2472 = vmatprep.subr.mxu0 0.0
      %2473 = vmatpush1.msra.mxu0 0.0
      %2474 = vmatprep.subr.mxu0 0.0
      %2475 = vmatpush1.msra.mxu0 0.0
      %2476 = vmatprep.subr.mxu0 0.0
      %2477 = vmatpush1.msra.mxu0 0.0
      %2478 = vmatprep.subr.mxu0 0.0
      %2479 = vmatpush1.msra.mxu0 0.0
      %2480 = vmatprep.mubr.f32.mxu0 0.0
      %v2481 = vand.u32 %v2160, 4294901760
      %v2482 = vsub.f32 %v2160, %v2481
      %v2483 = vand.u32 %v2482, 4294901760
      %2484 = vmatmul.mubr.f32.gmra.mrb[0].mxu0 %v2483
      %v2485 = vpop.f32.mrb[0].mxu0
      %v2486 = vadd.f32 %v2409, %v2485
      %v2487 = vpop.f32.mrb[0].mxu0
      %2488 = vdwg.mxu0
      %2489 = vmatprep.subr.mxu0 0.0
      %v2490 = vand.u32 %v2146, 4294901760
      %v2491 = vsub.f32 %v2146, %v2490
      %v2492 = vand.u32 %v2491, 4294901760
      %2493 = vmatpush1.msra.mxu0 %v2492
      %2494 = vmatprep.subr.mxu0 0.0
      %v2495 = vand.u32 %v2147, 4294901760
      %v2496 = vsub.f32 %v2147, %v2495
      %v2497 = vand.u32 %v2496, 4294901760
      %2498 = vmatpush1.msra.mxu0 %v2497
      %2499 = vmatprep.subr.mxu0 0.0
      %v2500 = vand.u32 %v2148, 4294901760
      %v2501 = vsub.f32 %v2148, %v2500
      %v2502 = vand.u32 %v2501, 4294901760
      %2503 = vmatpush1.msra.mxu0 %v2502
      %2504 = vmatprep.subr.mxu0 0.0
      %v2505 = vand.u32 %v2149, 4294901760
      %v2506 = vsub.f32 %v2149, %v2505
      %v2507 = vand.u32 %v2506, 4294901760
      %2508 = vmatpush1.msra.mxu0 %v2507
      %2509 = vmatprep.subr.mxu0 0.0
      %2510 = vmatpush1.msra.mxu0 0.0
      %2511 = vmatprep.subr.mxu0 0.0
      %2512 = vmatpush1.msra.mxu0 0.0
      %2513 = vmatprep.subr.mxu0 0.0
      %2514 = vmatpush1.msra.mxu0 0.0
      %2515 = vmatprep.subr.mxu0 0.0
      %2516 = vmatpush1.msra.mxu0 0.0
      %2517 = vmatprep.subr.mxu0 0.0
      %2518 = vmatpush1.msra.mxu0 0.0
      %2519 = vmatprep.subr.mxu0 0.0
      %2520 = vmatpush1.msra.mxu0 0.0
      %2521 = vmatprep.subr.mxu0 0.0
      %2522 = vmatpush1.msra.mxu0 0.0
      %2523 = vmatprep.subr.mxu0 0.0
      %2524 = vmatpush1.msra.mxu0 0.0
      %2525 = vmatprep.subr.mxu0 0.0
      %2526 = vmatpush1.msra.mxu0 0.0
      %2527 = vmatprep.subr.mxu0 0.0
      %2528 = vmatpush1.msra.mxu0 0.0
      %2529 = vmatprep.subr.mxu0 0.0
      %2530 = vmatpush1.msra.mxu0 0.0
      %2531 = vmatprep.subr.mxu0 0.0
      %2532 = vmatpush1.msra.mxu0 0.0
      %2533 = vmatprep.subr.mxu0 0.0
      %2534 = vmatpush1.msra.mxu0 0.0
      %2535 = vmatprep.subr.mxu0 0.0
      %2536 = vmatpush1.msra.mxu0 0.0
      %2537 = vmatprep.subr.mxu0 0.0
      %2538 = vmatpush1.msra.mxu0 0.0
      %2539 = vmatprep.subr.mxu0 0.0
      %2540 = vmatpush1.msra.mxu0 0.0
      %2541 = vmatprep.subr.mxu0 0.0
      %2542 = vmatpush1.msra.mxu0 0.0
      %2543 = vmatprep.subr.mxu0 0.0
      %2544 = vmatpush1.msra.mxu0 0.0
      %2545 = vmatprep.subr.mxu0 0.0
      %2546 = vmatpush1.msra.mxu0 0.0
      %2547 = vmatprep.subr.mxu0 0.0
      %2548 = vmatpush1.msra.mxu0 0.0
      %2549 = vmatprep.subr.mxu0 0.0
      %2550 = vmatpush1.msra.mxu0 0.0
      %2551 = vmatprep.subr.mxu0 0.0
      %2552 = vmatpush1.msra.mxu0 0.0
      %2553 = vmatprep.subr.mxu0 0.0
      %2554 = vmatpush1.msra.mxu0 0.0
      %2555 = vmatprep.subr.mxu0 0.0
      %2556 = vmatpush1.msra.mxu0 0.0
      %2557 = vmatprep.subr.mxu0 0.0
      %2558 = vmatpush1.msra.mxu0 0.0
      %2559 = vmatprep.subr.mxu0 0.0
      %2560 = vmatpush1.msra.mxu0 0.0
      %2561 = vmatprep.subr.mxu0 0.0
      %2562 = vmatpush1.msra.mxu0 0.0
      %2563 = vmatprep.subr.mxu0 0.0
      %2564 = vmatpush1.msra.mxu0 0.0
      %2565 = vmatprep.mubr.f32.mxu0 0.0
      %v2566 = vand.u32 %v2160, 4294901760
      %2567 = vmatmul.mubr.f32.gmra.mrb[0].mxu0 %v2566
      %v2568 = vpop.f32.mrb[0].mxu0
      %v2569 = vadd.f32 %v2486, %v2568
      %v2570 = vpop.f32.mrb[0].mxu0
      %2571 = vdwg.mxu0
      %2572 = vmatprep.subr.mxu0 0.0
      %v2573 = vand.u32 %v2146, 4294901760
      %2574 = vmatpush1.msra.mxu0 %v2573
      %2575 = vmatprep.subr.mxu0 0.0
      %v2576 = vand.u32 %v2147, 4294901760
      %2577 = vmatpush1.msra.mxu0 %v2576
      %2578 = vmatprep.subr.mxu0 0.0
      %v2579 = vand.u32 %v2148, 4294901760
      %2580 = vmatpush1.msra.mxu0 %v2579
      %2581 = vmatprep.subr.mxu0 0.0
      %v2582 = vand.u32 %v2149, 4294901760
      %2583 = vmatpush1.msra.mxu0 %v2582
      %2584 = vmatprep.subr.mxu0 0.0
      %2585 = vmatpush1.msra.mxu0 0.0
      %2586 = vmatprep.subr.mxu0 0.0
      %2587 = vmatpush1.msra.mxu0 0.0
      %2588 = vmatprep.subr.mxu0 0.0
      %2589 = vmatpush1.msra.mxu0 0.0
      %2590 = vmatprep.subr.mxu0 0.0
      %2591 = vmatpush1.msra.mxu0 0.0
      %2592 = vmatprep.subr.mxu0 0.0
      %2593 = vmatpush1.msra.mxu0 0.0
      %2594 = vmatprep.subr.mxu0 0.0
      %2595 = vmatpush1.msra.mxu0 0.0
      %2596 = vmatprep.subr.mxu0 0.0
      %2597 = vmatpush1.msra.mxu0 0.0
      %2598 = vmatprep.subr.mxu0 0.0
      %2599 = vmatpush1.msra.mxu0 0.0
      %2600 = vmatprep.subr.mxu0 0.0
      %2601 = vmatpush1.msra.mxu0 0.0
      %2602 = vmatprep.subr.mxu0 0.0
      %2603 = vmatpush1.msra.mxu0 0.0
      %2604 = vmatprep.subr.mxu0 0.0
      %2605 = vmatpush1.msra.mxu0 0.0
      %2606 = vmatprep.subr.mxu0 0.0
      %2607 = vmatpush1.msra.mxu0 0.0
      %2608 = vmatprep.subr.mxu0 0.0
      %2609 = vmatpush1.msra.mxu0 0.0
      %2610 = vmatprep.subr.mxu0 0.0
      %2611 = vmatpush1.msra.mxu0 0.0
      %2612 = vmatprep.subr.mxu0 0.0
      %2613 = vmatpush1.msra.mxu0 0.0
      %2614 = vmatprep.subr.mxu0 0.0
      %2615 = vmatpush1.msra.mxu0 0.0
      %2616 = vmatprep.subr.mxu0 0.0
      %2617 = vmatpush1.msra.mxu0 0.0
      %2618 = vmatprep.subr.mxu0 0.0
      %2619 = vmatpush1.msra.mxu0 0.0
      %2620 = vmatprep.subr.mxu0 0.0
      %2621 = vmatpush1.msra.mxu0 0.0
      %2622 = vmatprep.subr.mxu0 0.0
      %2623 = vmatpush1.msra.mxu0 0.0
      %2624 = vmatprep.subr.mxu0 0.0
      %2625 = vmatpush1.msra.mxu0 0.0
      %2626 = vmatprep.subr.mxu0 0.0
      %2627 = vmatpush1.msra.mxu0 0.0
      %2628 = vmatprep.subr.mxu0 0.0
      %2629 = vmatpush1.msra.mxu0 0.0
      %2630 = vmatprep.subr.mxu0 0.0
      %2631 = vmatpush1.msra.mxu0 0.0
      %2632 = vmatprep.subr.mxu0 0.0
      %2633 = vmatpush1.msra.mxu0 0.0
      %2634 = vmatprep.subr.mxu0 0.0
      %2635 = vmatpush1.msra.mxu0 0.0
      %2636 = vmatprep.subr.mxu0 0.0
      %2637 = vmatpush1.msra.mxu0 0.0
      %2638 = vmatprep.subr.mxu0 0.0
      %2639 = vmatpush1.msra.mxu0 0.0
      %2640 = vmatprep.mubr.f32.mxu0 0.0
      %v2641 = vand.u32 %v2160, 4294901760
      %2642 = vmatmul.mubr.f32.gmra.mrb[0].mxu0 %v2641
      %v2643 = vpop.f32.mrb[0].mxu0
      %v2644 = vadd.f32 %v2569, %v2643
      %v2645 = vpop.f32.mrb[0].mxu0
      %2646 = vdwg.mxu0
      %2647 = vst [vmem:[%s388] sm:$0x3] %v2644
      %2649 = vst.msk [vmem:[#allocation2] sm:$0x3] %vm411, %v2159
      %vm2650 = vcmask 1041408
      %v2651 = vsel %vm2650, %v2644, -inf
      %2652 = vmax.xlane.f32.xlu0 %v2651
      %v2653 = vpop.xlane.xlu0 %2652
      %vm2654 = vcmp.eq.f32.partialorder %v2644, %v2653
      %v2655 = vsel %vm2654, %v390, 128
      %v2656 = vsel %vm2650, %v2655, 2147483647
      %v2657 = vand.u32 %v2656, 65535
      %v2658 = vshra.s32 %v2656, 16
      %v2659 = vcvt.s32.f32 %v2657
      %v2660 = vcvt.s32.f32 %v2658
      %2661 = vmin.xlane.f32.xlu0 %v2660
      %v2662 = vpop.xlane.xlu0 %2661
      %vm2663 = vcmp.eq.f32.partialorder %v2660, %v2662
      %v2664 = vsel %vm2663, %v2659, inf
      %2665 = vmin.xlane.f32.xlu0 %v2664
      %v2666 = vpop.xlane.xlu0 %2665
      %v2667 = vcvt.f32.s32 %v2666
      %v2668 = vcvt.f32.s32 %v2662
      %v2669 = vshll.u32 %v2668, 16
      %v2670 = vadd.s32 %v2669, %v2667
      %vm2671 = vcmp.eq.s32.totalorder %v390, %v2670
      %v2672 = vsel %vm2671, 1, 0
      %v2673 = vcvt.s32.f32 %v2672
      %2674 = vst [vmem:[#allocation3] sm:$0x3] %v2673
      %p2675 = scmp.lt.s32.totalorder %s29, 4
      %s2676 = scalar_select %p2675, %s29, 4
      %s2677 = smul.addr %s2676, 2
      %s2678 = scalar_lea.vmem %s12, %s2677
      // Predicated region
      $region69: #{_fused_decode.1} parent=63 // pred_check
        %p2679 = pneg %p283
      $region70: #{_fused_decode.1} parent=63 // pred_check_branch
        %2681 = sbr.rel (%p2679) target = $region72
      $region71: #{_fused_decode.1} parent=63 // pred_region
        _
      $region72: #{_fused_decode.1} parent=63 // pred_fallthru
        _
    $region64: #{_fused_decode.1} parent=5 // pred_fallthru
      _
    %p2682 = scmp.le.s32.totalorder 2, %s24
    // Predicated region
    $region73: #{_fused_decode.1} parent=5 // pred_check
      %p2683 = pneg %p2682
    $region74: #{_fused_decode.1} parent=5 // pred_check_branch
      %2685 = sbr.rel (%p2683) target = $region76
    $region75: #{_fused_decode.1} parent=5 // pred_region
      %s2686 = ssub.s32 %s24, 2
      // Predicated region
      $region77: #{_fused_decode.1} parent=75 // pred_check
        %p2687 = pneg %p289
      $region78: #{_fused_decode.1} parent=75 // pred_check_branch
        %2689 = sbr.rel (%p2687) target = $region80
      $region79: #{_fused_decode.1} parent=75 // pred_region
        %p2690 = scmp.lt.s32.totalorder %s30, 4
        %s2691 = scalar_select %p2690, %s30, 4
        %s2692 = smul.addr %s2691, 2
        %s2693 = scalar_lea.vmem %s12, %s2692
      $region80: #{_fused_decode.1} parent=75 // pred_fallthru
        _
    $region76: #{_fused_decode.1} parent=5 // pred_fallthru
      _
  $region6: #{_fused_decode.1} parent=0 // loop_footer
    %s28 = sadd.s32 1, %s24
  $region7: #{_fused_decode.1} parent=0 // loop_footer_branch
    %23 = sbr.rel target = $region3
  $region8: #{_fused_decode.1} parent=0 // loop_exit
    _

</llo_original>
